<compile_context>
chip_gen: v6e
topology: v6e:2x2x1
jax: 0.10.0
libtpu: 0.0.40
codegen_flags: <defaults>
</compile_context>

<pallas_src>
import functools
import math

import jax
import jax.numpy as jnp
from jax.experimental import pallas as pl
from jax.experimental.pallas import tpu as pltpu

_LN_EPS = 1e-5
_SQRT_HALF = 0.7071067811865476


def _round_up(x, m):
    return ((x + m - 1) // m) * m


def _vmem_limit(nbytes):
    # actual need + ~50% headroom, floored at 16 MiB, capped well under physical.
    return int(min(max(nbytes * 3 // 2 + (2 << 20), 16 << 20), 96 << 20))


# --------------------------------------------------------------------------- #
# in-kernel math helpers (f32)
# --------------------------------------------------------------------------- #
def _erf(x):
    # Abramowitz & Stegun 7.1.26, max abs error ~1.5e-7. Only exp/mul/add/where.
    a1, a2, a3, a4, a5 = (0.254829592, -0.284496736, 1.421413741,
                          -1.453152027, 1.061405429)
    p = 0.3275911
    sign = jnp.where(x >= 0.0, 1.0, -1.0)
    ax = jnp.abs(x)
    t = 1.0 / (1.0 + p * ax)
    poly = ((((a5 * t + a4) * t + a3) * t + a2) * t + a1) * t
    return sign * (1.0 - poly * jnp.exp(-ax * ax))


def _gelu_exact(x):
    # PyTorch nn.GELU default (approximate='none'): x * Phi(x)
    return 0.5 * x * (1.0 + _erf(x * _SQRT_HALF))


def _layernorm(x, gamma, beta):
    mean = jnp.mean(x, axis=-1, keepdims=True)
    var = jnp.mean(jnp.square(x - mean), axis=-1, keepdims=True)
    return (x - mean) * jax.lax.rsqrt(var + _LN_EPS) * gamma + beta


# --------------------------------------------------------------------------- #
# kernels
# --------------------------------------------------------------------------- #
def _inproj_kernel(x_ref, w_ref, g_ref, b_ref, o_ref):
    # o = LayerNorm(GELU(x @ W_in)); full mlp_dim kept lane-dense per row tile.
    h = jnp.dot(x_ref[...].astype(w_ref.dtype), w_ref[...],
                preferred_element_type=jnp.float32)
    h = _gelu_exact(h)
    o_ref[...] = _layernorm(h, g_ref[...], b_ref[...]).astype(o_ref.dtype)


def _block_kernel(x_ref, g_ref, b_ref, w1_ref, w2_ref, w3_ref, o_ref,
                  ln_scr, acc_scr):
    # grid = (row_tiles, hidden_tiles); hidden axis is last and "arbitrary".
    k = pl.program_id(1)

    @pl.when(k == 0)
    def _init():
        x = x_ref[...].astype(jnp.float32)
        ln_scr[...] = _layernorm(x, g_ref[...], b_ref[...]).astype(ln_scr.dtype)
        acc_scr[...] = jnp.zeros_like(acc_scr)

    h = ln_scr[...]                                  # (TM, mlp_dim), matmul dtype
    h1 = jnp.dot(h, w1_ref[...], preferred_element_type=jnp.float32)
    h2 = jnp.dot(h, w2_ref[...], preferred_element_type=jnp.float32)
    gated = (h1 * jax.nn.sigmoid(h1)) * h2           # SwiGLU gate, f32 on VPU/EUP
    acc_scr[...] += jnp.dot(gated.astype(w3_ref.dtype), w3_ref[...],
                            preferred_element_type=jnp.float32)

    @pl.when(k == pl.num_programs(1) - 1)
    def _finalize():
        o_ref[...] = (x_ref[...].astype(jnp.float32)
                      + acc_scr[...]).astype(o_ref.dtype)


def _outproj_kernel(x_ref, w_ref, o_ref):
    o_ref[...] = jnp.dot(x_ref[...].astype(w_ref.dtype), w_ref[...],
                         preferred_element_type=jnp.float32).astype(o_ref.dtype)


# --------------------------------------------------------------------------- #
# pallas_call wrappers
# --------------------------------------------------------------------------- #
def _call_inproj(x2d, w, g2d, b2d, tm):
    rows, in_dim = x2d.shape
    mlp_dim = w.shape[1]
    act_b = x2d.dtype.itemsize
    w_b = w.dtype.itemsize
    blk_bytes = (tm * in_dim * act_b + in_dim * mlp_dim * w_b
                 + 2 * mlp_dim * 4 + tm * mlp_dim * act_b)
    cost = pl.CostEstimate(
        flops=2 * rows * in_dim * mlp_dim,
        transcendentals=rows * mlp_dim,
        bytes_accessed=(rows * in_dim * act_b + in_dim * mlp_dim * w_b
                        + rows * mlp_dim * act_b + 2 * mlp_dim * 4))
    return pl.pallas_call(
        _inproj_kernel,
        out_shape=jax.ShapeDtypeStruct((rows, mlp_dim), x2d.dtype),
        grid_spec=pltpu.PrefetchScalarGridSpec(
            num_scalar_prefetch=0,
            grid=(rows // tm,),
            in_specs=[
                pl.BlockSpec((tm, in_dim), lambda i: (i, 0)),
                pl.BlockSpec((in_dim, mlp_dim), lambda i: (0, 0)),
                pl.BlockSpec((1, mlp_dim), lambda i: (0, 0)),
                pl.BlockSpec((1, mlp_dim), lambda i: (0, 0)),
            ],
            out_specs=pl.BlockSpec((tm, mlp_dim), lambda i: (i, 0)),
        ),
        compiler_params=pltpu.CompilerParams(
            dimension_semantics=("parallel",),
            vmem_limit_bytes=_vmem_limit(2 * blk_bytes)),
        cost_estimate=cost,
    )(x2d, w, g2d, b2d)


def _call_block(h2d, g2d, b2d, w1, w2, w3, tm, th):
    rows, mlp_dim = h2d.shape
    hidden = w1.shape[1]
    act_b = h2d.dtype.itemsize
    w_b = w1.dtype.itemsize
    compute_dtype = w1.dtype
    blk_bytes = (2 * tm * mlp_dim * act_b + 2 * mlp_dim * 4
                 + 3 * mlp_dim * th * w_b)
    scratch_bytes = tm * mlp_dim * (jnp.dtype(compute_dtype).itemsize + 4)
    cost = pl.CostEstimate(
        flops=6 * rows * mlp_dim * hidden,
        transcendentals=rows * hidden,
        bytes_accessed=(2 * rows * mlp_dim * act_b
                        + 3 * mlp_dim * hidden * w_b + 2 * mlp_dim * 4))
    return pl.pallas_call(
        _block_kernel,
        out_shape=jax.ShapeDtypeStruct((rows, mlp_dim), h2d.dtype),
        grid_spec=pltpu.PrefetchScalarGridSpec(
            num_scalar_prefetch=0,
            grid=(rows // tm, hidden // th),
            in_specs=[
                pl.BlockSpec((tm, mlp_dim), lambda i, k: (i, 0)),
                pl.BlockSpec((1, mlp_dim), lambda i, k: (0, 0)),
                pl.BlockSpec((1, mlp_dim), lambda i, k: (0, 0)),
                pl.BlockSpec((mlp_dim, th), lambda i, k: (0, k)),   # W1 slice
                pl.BlockSpec((mlp_dim, th), lambda i, k: (0, k)),   # W2 slice
                pl.BlockSpec((th, mlp_dim), lambda i, k: (k, 0)),   # W3 slice
            ],
            out_specs=pl.BlockSpec((tm, mlp_dim), lambda i, k: (i, 0)),
            scratch_shapes=[
                pltpu.VMEM((tm, mlp_dim), compute_dtype),   # LN(x), reused across k
                pltpu.VMEM((tm, mlp_dim), jnp.float32),     # f32 accumulator
            ],
        ),
        compiler_params=pltpu.CompilerParams(
            dimension_semantics=("parallel", "arbitrary"),
            vmem_limit_bytes=_vmem_limit(2 * blk_bytes + scratch_bytes)),
        cost_estimate=cost,
    )(h2d, g2d, b2d, w1, w2, w3)


def _call_outproj(h2d, w, tm):
    rows, mlp_dim = h2d.shape
    out_dim = w.shape[1]
    act_b = h2d.dtype.itemsize
    w_b = w.dtype.itemsize
    blk_bytes = tm * mlp_dim * act_b + mlp_dim * out_dim * w_b + tm * out_dim * act_b
    cost = pl.CostEstimate(
        flops=2 * rows * mlp_dim * out_dim,
        transcendentals=0,
        bytes_accessed=(rows * mlp_dim * act_b + mlp_dim * out_dim * w_b
                        + rows * out_dim * act_b))
    return pl.pallas_call(
        _outproj_kernel,
        out_shape=jax.ShapeDtypeStruct((rows, out_dim), h2d.dtype),
        grid_spec=pltpu.PrefetchScalarGridSpec(
            num_scalar_prefetch=0,
            grid=(rows // tm,),
            in_specs=[
                pl.BlockSpec((tm, mlp_dim), lambda i: (i, 0)),
                pl.BlockSpec((mlp_dim, out_dim), lambda i: (0, 0)),
            ],
            out_specs=pl.BlockSpec((tm, out_dim), lambda i: (i, 0)),
        ),
        compiler_params=pltpu.CompilerParams(
            dimension_semantics=("parallel",),
            vmem_limit_bytes=_vmem_limit(2 * blk_bytes)),
        cost_estimate=cost,
    )(h2d, w)


# --------------------------------------------------------------------------- #
# Encoder forward
# --------------------------------------------------------------------------- #
@functools.partial(jax.jit, static_argnames=("row_tile", "hidden_tile"))
def encoder_forward(x, params, *, row_tile=256, hidden_tile=512):
    """x: (..., in_dim). Weights are used in their stored (fan_in, fan_out) layout
    and stored dtype (cast once with cast_params_for_matmul for bf16 MXU rate)."""
    in_dim = x.shape[-1]
    orig_shape = x.shape
    x2d = x.reshape(-1, in_dim)
    n_rows = x2d.shape[0]

    # Large MXU-friendly row tile, clamped to the (8-aligned) problem size.
    tm = _round_up(min(row_tile, _round_up(n_rows, 8)), 8)
    n_padded = _round_up(n_rows, tm)
    if n_padded != n_rows:
        # Zero rows are harmless: every op below is row-wise independent.
        x2d = jnp.pad(x2d, ((0, n_padded - n_rows), (0, 0)))

    mlp_dim = params["w_in"].shape[1]
    g0 = params["ln0_g"].reshape(1, mlp_dim).astype(jnp.float32)
    b0 = params["ln0_b"].reshape(1, mlp_dim).astype(jnp.float32)
    h = _call_inproj(x2d, params["w_in"], g0, b0, tm)

    for blk in params["blocks"]:
        hidden = blk["w1"].shape[1]
        th = min(hidden_tile, hidden)
        if hidden % th != 0:
            th = math.gcd(hidden, th)
            if th % 128 != 0:
                th = hidden          # fall back to a single resident slice
        g = blk["ln_g"].reshape(1, mlp_dim).astype(jnp.float32)
        b = blk["ln_b"].reshape(1, mlp_dim).astype(jnp.float32)
        h = _call_block(h, g, b, blk["w1"], blk["w2"], blk["w3"], tm, th)

    out = _call_outproj(h, params["w_out"], tm)
    if n_padded != n_rows:
        out = out[:n_rows]
    return out.reshape(orig_shape[:-1] + (out.shape[-1],))


# --------------------------------------------------------------------------- #
# params (stored pre-transposed -> no per-call w.T) and pure-JAX reference
# --------------------------------------------------------------------------- #
def init_encoder_params(key, in_dim=512, mlp_dim=1024, mlp_hidden_dim=512,
                        mlp_layers=1, dtype=jnp.float32):
    def linear(k, fan_in, fan_out):
        bound = 1.0 / math.sqrt(fan_in)
        return jax.random.uniform(k, (fan_in, fan_out), dtype, -bound, bound)

    keys = jax.random.split(key, 2 + 3 * mlp_layers)
    params = {
        "w_in": linear(keys[0], in_dim, mlp_dim),
        "ln0_g": jnp.ones((mlp_dim,), dtype),
        "ln0_b": jnp.zeros((mlp_dim,), dtype),
        "blocks": [],
        "w_out": linear(keys[1], mlp_dim, in_dim),
    }
    for l in range(mlp_layers):
        k1, k2, k3 = keys[2 + 3 * l: 5 + 3 * l]
        params["blocks"].append({
            "ln_g": jnp.ones((mlp_dim,), dtype),
            "ln_b": jnp.zeros((mlp_dim,), dtype),
            "w1": linear(k1, mlp_dim, mlp_hidden_dim),
            "w2": linear(k2, mlp_dim, mlp_hidden_dim),
            "w3": linear(k3, mlp_hidden_dim, mlp_dim),
        })
    return params


def cast_params_for_matmul(params, compute_dtype=jnp.bfloat16):
    """One-time cast of matmul weights (bf16 MXU rate on v6e/v7x, halves weight
    HBM/VMEM traffic). LayerNorm affine params and accumulation stay f32."""
    out = dict(params)
    out["w_in"] = params["w_in"].astype(compute_dtype)
    out["w_out"] = params["w_out"].astype(compute_dtype)
    out["blocks"] = [{"ln_g": b["ln_g"], "ln_b": b["ln_b"],
                      "w1": b["w1"].astype(compute_dtype),
                      "w2": b["w2"].astype(compute_dtype),
                      "w3": b["w3"].astype(compute_dtype)}
                     for b in params["blocks"]]
    return out


def _layernorm_ref(x, g, b):
    mean = jnp.mean(x, axis=-1, keepdims=True)
    var = jnp.mean(jnp.square(x - mean), axis=-1, keepdims=True)
    return (x - mean) * jax.lax.rsqrt(var + _LN_EPS) * g + b


def encoder_reference(x, params):
    hi = jax.lax.Precision.HIGHEST
    h = jnp.dot(x, params["w_in"].astype(jnp.float32), precision=hi)
    h = jax.nn.gelu(h, approximate=False)              # PyTorch nn.GELU default
    h = _layernorm_ref(h, params["ln0_g"], params["ln0_b"])
    for blk in params["blocks"]:
        n = _layernorm_ref(h, blk["ln_g"], blk["ln_b"])
        g1 = jnp.dot(n, blk["w1"].astype(jnp.float32), precision=hi)
        g2 = jnp.dot(n, blk["w2"].astype(jnp.float32), precision=hi)
        h = h + jnp.dot(jax.nn.silu(g1) * g2, blk["w3"].astype(jnp.float32),
                        precision=hi)
    return jnp.dot(h, params["w_out"].astype(jnp.float32), precision=hi)


# --------------------------------------------------------------------------- #
if __name__ == "__main__":
    key = jax.random.PRNGKey(0)
    kx, kp = jax.random.split(key)

    # Small but lane-aligned demo shapes (multiples of 128 -> no masked stores).
    batch, seq, in_dim, mlp_dim, mlp_hidden_dim, mlp_layers = 2, 8, 128, 256, 256, 1
    x = jax.random.normal(kx, (batch, seq, in_dim), jnp.float32)
    params = init_encoder_params(kp, in_dim, mlp_dim, mlp_hidden_dim, mlp_layers,
                                 dtype=jnp.float32)
    ref = encoder_reference(x, params)

    # 1) f32-weight path; hidden_tile=128 exercises the streamed-hidden
    #    accumulation loop even at this small size.
    out_f32 = jax.block_until_ready(
        encoder_forward(x, params, row_tile=256, hidden_tile=128))
    assert out_f32.shape == x.shape
    assert bool(jnp.all(jnp.isfinite(out_f32)))
    assert jnp.allclose(out_f32, ref, atol=5e-2, rtol=5e-2), \
        float(jnp.max(jnp.abs(out_f32 - ref)))

    # 2) bf16 matmul-operand path (f32 accumulation, f32 gate/LayerNorm math):
    #    the v6e/v7x fast path — looser tolerance due to bf16 operand rounding.
    params_bf16 = cast_params_for_matmul(params, jnp.bfloat16)
    out_bf16 = jax.block_until_ready(
        encoder_forward(x, params_bf16, row_tile=256, hidden_tile=128))
    assert out_bf16.shape == x.shape
    assert bool(jnp.all(jnp.isfinite(out_bf16)))
    assert jnp.allclose(out_bf16.astype(jnp.float32), ref, atol=0.2, rtol=0.1), \
        float(jnp.max(jnp.abs(out_bf16.astype(jnp.float32) - ref)))

    print("KERNEL_OK")
</pallas_src>

<mosaic_0001>
module attributes {stable_mosaic.version = 11 : i64} {
  func.func @_outproj_kernel(%arg0: i32, %arg1: memref<16x256xf32, #tpu.memory_space<vmem>>, %arg2: memref<256x128xf32, #tpu.memory_space<vmem>>, %arg3: memref<16x128xf32, #tpu.memory_space<vmem>>) attributes {dimension_semantics = [#tpu.dimension_semantics<parallel>], iteration_bounds = array<i64: 1>, scalar_prefetch = 0 : i64, scratch_operands = 0 : i64, tpu.core_type = #tpu.core_type<tc>, window_params = [{transform_indices = @transform_0, window_bounds = array<i64: 16, 256>}, {pipeline_mode = #tpu.pipeline_mode<synchronous>, transform_indices = @transform_1, window_bounds = array<i64: 256, 128>}, {transform_indices = @transform_2, window_bounds = array<i64: 16, 128>}]} {
    %c0 = arith.constant 0 : index
    %c0_0 = arith.constant 0 : index
    %0 = vector.load %arg1[%c0, %c0_0] : memref<16x256xf32, #tpu.memory_space<vmem>>, vector<16x256xf32>
    %c0_1 = arith.constant 0 : index
    %c0_2 = arith.constant 0 : index
    %1 = vector.load %arg2[%c0_1, %c0_2] : memref<256x128xf32, #tpu.memory_space<vmem>>, vector<256x128xf32>
    %cst = arith.constant dense<0.000000e+00> : vector<16x128xf32>
    %2 = tpu.matmul %0, %1, %cst {dimension_numbers = #tpu.dot_dimension_numbers<[1], [0], [0], [1], [0, 0, 1, 1], [], []>} : vector<16x256xf32>, vector<256x128xf32>, vector<16x128xf32> -> vector<16x128xf32>
    %c0_3 = arith.constant 0 : index
    %c0_4 = arith.constant 0 : index
    %3 = vector.load %arg3[%c0_3, %c0_4] : memref<16x128xf32, #tpu.memory_space<vmem>>, vector<16x128xf32>
    tpu.vector_store %arg3[%c0_3, %c0_4], %2 {strides = array<i32>} : memref<16x128xf32, #tpu.memory_space<vmem>>, vector<16x128xf32>,
    return
  }
  func.func @transform_0(%arg0: i32) -> (i32, i32) {
    %c0_i32 = arith.constant 0 : i32
    %c0_i32_0 = arith.constant 0 : i32
    return %arg0, %c0_i32 : i32, i32
  }
  func.func @transform_1(%arg0: i32) -> (i32, i32) {
    %c0_i32 = arith.constant 0 : i32
    %c0_i32_0 = arith.constant 0 : i32
    %c0_i32_1 = arith.constant 0 : i32
    return %c0_i32, %c0_i32_0 : i32, i32
  }
  func.func @transform_2(%arg0: i32) -> (i32, i32) {
    %c0_i32 = arith.constant 0 : i32
    %c0_i32_0 = arith.constant 0 : i32
    return %arg0, %c0_i32 : i32, i32
  }
}

module attributes {stable_mosaic.version = 11 : i64} {
  func.func @_inproj_kernel(%arg0: i32, %arg1: memref<16x128xf32, #tpu.memory_space<vmem>>, %arg2: memref<128x256xf32, #tpu.memory_space<vmem>>, %arg3: memref<1x256xf32, #tpu.memory_space<vmem>>, %arg4: memref<1x256xf32, #tpu.memory_space<vmem>>, %arg5: memref<16x256xf32, #tpu.memory_space<vmem>>) attributes {dimension_semantics = [#tpu.dimension_semantics<parallel>], iteration_bounds = array<i64: 1>, scalar_prefetch = 0 : i64, scratch_operands = 0 : i64, tpu.core_type = #tpu.core_type<tc>, window_params = [{transform_indices = @transform_0, window_bounds = array<i64: 16, 128>}, {pipeline_mode = #tpu.pipeline_mode<synchronous>, transform_indices = @transform_1, window_bounds = array<i64: 128, 256>}, {pipeline_mode = #tpu.pipeline_mode<synchronous>, transform_indices = @transform_2, window_bounds = array<i64: 1, 256>}, {pipeline_mode = #tpu.pipeline_mode<synchronous>, transform_indices = @transform_3, window_bounds = array<i64: 1, 256>}, {transform_indices = @transform_4, window_bounds = array<i64: 16, 256>}]} {
    %c0 = arith.constant 0 : index
    %c0_0 = arith.constant 0 : index
    %0 = vector.load %arg1[%c0, %c0_0] : memref<16x128xf32, #tpu.memory_space<vmem>>, vector<16x128xf32>
    %c0_1 = arith.constant 0 : index
    %c0_2 = arith.constant 0 : index
    %1 = vector.load %arg2[%c0_1, %c0_2] : memref<128x256xf32, #tpu.memory_space<vmem>>, vector<128x256xf32>
    %cst = arith.constant dense<0.000000e+00> : vector<16x256xf32>
    %2 = tpu.matmul %0, %1, %cst {dimension_numbers = #tpu.dot_dimension_numbers<[1], [0], [0], [1], [0, 0, 1, 1], [], []>} : vector<16x128xf32>, vector<128x256xf32>, vector<16x256xf32> -> vector<16x256xf32>
    %cst_3 = arith.constant 5.000000e-01 : f32
    %3 = vector.broadcast %cst_3 : f32 to vector<16x256xf32>
    %4 = arith.mulf %3, %2 : vector<16x256xf32>
    %cst_4 = arith.constant 0.707106769 : f32
    %5 = vector.broadcast %cst_4 : f32 to vector<16x256xf32>
    %6 = arith.mulf %2, %5 : vector<16x256xf32>
    %cst_5 = arith.constant 0.000000e+00 : f32
    %7 = vector.broadcast %cst_5 : f32 to vector<16x256xf32>
    %8 = arith.cmpf oge, %6, %7 : vector<16x256xf32>
    %cst_6 = arith.constant 1.000000e+00 : f32
    %cst_7 = arith.constant -1.000000e+00 : f32
    %9 = vector.broadcast %cst_6 : f32 to vector<16x256xf32>
    %10 = vector.broadcast %cst_7 : f32 to vector<16x256xf32>
    %11 = arith.select %8, %9, %10 : vector<16x256xi1>, vector<16x256xf32>
    %12 = math.absf %6 : vector<16x256xf32>
    %cst_8 = arith.constant 0.327591091 : f32
    %13 = vector.broadcast %cst_8 : f32 to vector<16x256xf32>
    %14 = arith.mulf %13, %12 : vector<16x256xf32>
    %cst_9 = arith.constant 1.000000e+00 : f32
    %15 = vector.broadcast %cst_9 : f32 to vector<16x256xf32>
    %16 = arith.addf %15, %14 : vector<16x256xf32>
    %cst_10 = arith.constant 1.000000e+00 : f32
    %17 = vector.broadcast %cst_10 : f32 to vector<16x256xf32>
    %18 = arith.divf %17, %16 : vector<16x256xf32>
    %cst_11 = arith.constant 1.06140542 : f32
    %19 = vector.broadcast %cst_11 : f32 to vector<16x256xf32>
    %20 = arith.mulf %19, %18 : vector<16x256xf32>
    %cst_12 = arith.constant -1.45315206 : f32
    %21 = vector.broadcast %cst_12 : f32 to vector<16x256xf32>
    %22 = arith.addf %20, %21 : vector<16x256xf32>
    %23 = arith.mulf %22, %18 : vector<16x256xf32>
    %cst_13 = arith.constant 1.42141378 : f32
    %24 = vector.broadcast %cst_13 : f32 to vector<16x256xf32>
    %25 = arith.addf %23, %24 : vector<16x256xf32>
    %26 = arith.mulf %25, %18 : vector<16x256xf32>
    %cst_14 = arith.constant -0.284496725 : f32
    %27 = vector.broadcast %cst_14 : f32 to vector<16x256xf32>
    %28 = arith.addf %26, %27 : vector<16x256xf32>
    %29 = arith.mulf %28, %18 : vector<16x256xf32>
    %cst_15 = arith.constant 0.254829586 : f32
    %30 = vector.broadcast %cst_15 : f32 to vector<16x256xf32>
    %31 = arith.addf %29, %30 : vector<16x256xf32>
    %32 = arith.mulf %31, %18 : vector<16x256xf32>
    %cst_16 = arith.constant 0.000000e+00 : f32
    %33 = vector.broadcast %cst_16 : f32 to vector<16x256xf32>
    %34 = arith.subf %33, %12 : vector<16x256xf32>
    %35 = arith.mulf %34, %12 : vector<16x256xf32>
    %36 = math.exp %35 : vector<16x256xf32>
    %37 = arith.mulf %32, %36 : vector<16x256xf32>
    %cst_17 = arith.constant 1.000000e+00 : f32
    %38 = vector.broadcast %cst_17 : f32 to vector<16x256xf32>
    %39 = arith.subf %38, %37 : vector<16x256xf32>
    %40 = arith.mulf %11, %39 : vector<16x256xf32>
    %cst_18 = arith.constant 1.000000e+00 : f32
    %41 = vector.broadcast %cst_18 : f32 to vector<16x256xf32>
    %42 = arith.addf %41, %40 : vector<16x256xf32>
    %43 = arith.mulf %4, %42 : vector<16x256xf32>
    %c0_19 = arith.constant 0 : index
    %c0_20 = arith.constant 0 : index
    %44 = vector.load %arg3[%c0_19, %c0_20] : memref<1x256xf32, #tpu.memory_space<vmem>>, vector<1x256xf32>
    %c0_21 = arith.constant 0 : index
    %c0_22 = arith.constant 0 : index
    %45 = vector.load %arg4[%c0_21, %c0_22] : memref<1x256xf32, #tpu.memory_space<vmem>>, vector<1x256xf32>
    %cst_23 = arith.constant dense<0.000000e+00> : vector<16xf32>
    %46 = vector.multi_reduction <add>, %43, %cst_23 [1] : vector<16x256xf32> to vector<16xf32>
    %47 = vector.shape_cast %46 : vector<16xf32> to vector<16x1xf32>
    %cst_24 = arith.constant 2.560000e+02 : f32
    %48 = vector.broadcast %cst_24 : f32 to vector<16x1xf32>
    %49 = arith.divf %47, %48 : vector<16x1xf32>
    %50 = vector.broadcast %49 : vector<16x1xf32> to vector<16x256xf32>
    %51 = arith.subf %43, %50 : vector<16x256xf32>
    %52 = arith.mulf %51, %51 : vector<16x256xf32>
    %cst_25 = arith.constant dense<0.000000e+00> : vector<16xf32>
    %53 = vector.multi_reduction <add>, %52, %cst_25 [1] : vector<16x256xf32> to vector<16xf32>
    %54 = vector.shape_cast %53 : vector<16xf32> to vector<16x1xf32>
    %cst_26 = arith.constant 2.560000e+02 : f32
    %55 = vector.broadcast %cst_26 : f32 to vector<16x1xf32>
    %56 = arith.divf %54, %55 : vector<16x1xf32>
    %57 = vector.broadcast %49 : vector<16x1xf32> to vector<16x256xf32>
    %58 = arith.subf %43, %57 : vector<16x256xf32>
    %cst_27 = arith.constant 9.99999974E-6 : f32
    %59 = vector.broadcast %cst_27 : f32 to vector<16x1xf32>
    %60 = arith.addf %56, %59 : vector<16x1xf32>
    %61 = math.rsqrt %60 : vector<16x1xf32>
    %62 = vector.broadcast %61 : vector<16x1xf32> to vector<16x256xf32>
    %63 = arith.mulf %58, %62 : vector<16x256xf32>
    %64 = vector.broadcast %44 : vector<1x256xf32> to vector<16x256xf32>
    %65 = arith.mulf %63, %64 : vector<16x256xf32>
    %66 = vector.broadcast %45 : vector<1x256xf32> to vector<16x256xf32>
    %67 = arith.addf %65, %66 : vector<16x256xf32>
    %c0_28 = arith.constant 0 : index
    %c0_29 = arith.constant 0 : index
    %68 = vector.load %arg5[%c0_28, %c0_29] : memref<16x256xf32, #tpu.memory_space<vmem>>, vector<16x256xf32>
    tpu.vector_store %arg5[%c0_28, %c0_29], %67 {strides = array<i32>} : memref<16x256xf32, #tpu.memory_space<vmem>>, vector<16x256xf32>,
    return
  }
  func.func @transform_0(%arg0: i32) -> (i32, i32) {
    %c0_i32 = arith.constant 0 : i32
    %c0_i32_0 = arith.constant 0 : i32
    return %arg0, %c0_i32 : i32, i32
  }
  func.func @transform_1(%arg0: i32) -> (i32, i32) {
    %c0_i32 = arith.constant 0 : i32
    %c0_i32_0 = arith.constant 0 : i32
    %c0_i32_1 = arith.constant 0 : i32
    return %c0_i32, %c0_i32_0 : i32, i32
  }
  func.func @transform_2(%arg0: i32) -> (i32, i32) {
    %c0_i32 = arith.constant 0 : i32
    %c0_i32_0 = arith.constant 0 : i32
    %c0_i32_1 = arith.constant 0 : i32
    return %c0_i32, %c0_i32_0 : i32, i32
  }
  func.func @transform_3(%arg0: i32) -> (i32, i32) {
    %c0_i32 = arith.constant 0 : i32
    %c0_i32_0 = arith.constant 0 : i32
    %c0_i32_1 = arith.constant 0 : i32
    return %c0_i32, %c0_i32_0 : i32, i32
  }
  func.func @transform_4(%arg0: i32) -> (i32, i32) {
    %c0_i32 = arith.constant 0 : i32
    %c0_i32_0 = arith.constant 0 : i32
    return %arg0, %c0_i32 : i32, i32
  }
}

module attributes {stable_mosaic.version = 11 : i64} {
  func.func @_block_kernel(%arg0: i32, %arg1: i32, %arg2: memref<16x256xf32, #tpu.memory_space<vmem>>, %arg3: memref<1x256xf32, #tpu.memory_space<vmem>>, %arg4: memref<1x256xf32, #tpu.memory_space<vmem>>, %arg5: memref<256x128xf32, #tpu.memory_space<vmem>>, %arg6: memref<256x128xf32, #tpu.memory_space<vmem>>, %arg7: memref<128x256xf32, #tpu.memory_space<vmem>>, %arg8: memref<16x256xf32, #tpu.memory_space<vmem>>, %arg9: memref<16x256xf32, #tpu.memory_space<vmem>>, %arg10: memref<16x256xf32, #tpu.memory_space<vmem>>) attributes {dimension_semantics = [#tpu.dimension_semantics<parallel>, #tpu.dimension_semantics<arbitrary>], iteration_bounds = array<i64: 1, 2>, scalar_prefetch = 0 : i64, scratch_operands = 2 : i64, tpu.core_type = #tpu.core_type<tc>, window_params = [{transform_indices = @transform_0, window_bounds = array<i64: 16, 256>}, {pipeline_mode = #tpu.pipeline_mode<synchronous>, transform_indices = @transform_1, window_bounds = array<i64: 1, 256>}, {pipeline_mode = #tpu.pipeline_mode<synchronous>, transform_indices = @transform_2, window_bounds = array<i64: 1, 256>}, {transform_indices = @transform_3, window_bounds = array<i64: 256, 128>}, {transform_indices = @transform_4, window_bounds = array<i64: 256, 128>}, {transform_indices = @transform_5, window_bounds = array<i64: 128, 256>}, {transform_indices = @transform_6, window_bounds = array<i64: 16, 256>}]} {
    %c0_i32 = arith.constant 0 : i32
    %0 = arith.cmpi eq, %arg1, %c0_i32 : i32
    %1 = arith.extui %0 : i1 to i32
    %c0_i32_0 = arith.constant 0 : i32
    %2 = arith.cmpi ne, %1, %c0_i32_0 : i32
    scf.if %2 {
      %c0_16 = arith.constant 0 : index
      %c0_17 = arith.constant 0 : index
      %23 = vector.load %arg2[%c0_16, %c0_17] : memref<16x256xf32, #tpu.memory_space<vmem>>, vector<16x256xf32>
      %c0_18 = arith.constant 0 : index
      %c0_19 = arith.constant 0 : index
      %24 = vector.load %arg3[%c0_18, %c0_19] : memref<1x256xf32, #tpu.memory_space<vmem>>, vector<1x256xf32>
      %c0_20 = arith.constant 0 : index
      %c0_21 = arith.constant 0 : index
      %25 = vector.load %arg4[%c0_20, %c0_21] : memref<1x256xf32, #tpu.memory_space<vmem>>, vector<1x256xf32>
      %cst_22 = arith.constant dense<0.000000e+00> : vector<16xf32>
      %26 = vector.multi_reduction <add>, %23, %cst_22 [1] : vector<16x256xf32> to vector<16xf32>
      %27 = vector.shape_cast %26 : vector<16xf32> to vector<16x1xf32>
      %cst_23 = arith.constant 2.560000e+02 : f32
      %28 = vector.broadcast %cst_23 : f32 to vector<16x1xf32>
      %29 = arith.divf %27, %28 : vector<16x1xf32>
      %30 = vector.broadcast %29 : vector<16x1xf32> to vector<16x256xf32>
      %31 = arith.subf %23, %30 : vector<16x256xf32>
      %32 = arith.mulf %31, %31 : vector<16x256xf32>
      %cst_24 = arith.constant dense<0.000000e+00> : vector<16xf32>
      %33 = vector.multi_reduction <add>, %32, %cst_24 [1] : vector<16x256xf32> to vector<16xf32>
      %34 = vector.shape_cast %33 : vector<16xf32> to vector<16x1xf32>
      %cst_25 = arith.constant 2.560000e+02 : f32
      %35 = vector.broadcast %cst_25 : f32 to vector<16x1xf32>
      %36 = arith.divf %34, %35 : vector<16x1xf32>
      %37 = vector.broadcast %29 : vector<16x1xf32> to vector<16x256xf32>
      %38 = arith.subf %23, %37 : vector<16x256xf32>
      %cst_26 = arith.constant 9.99999974E-6 : f32
      %39 = vector.broadcast %cst_26 : f32 to vector<16x1xf32>
      %40 = arith.addf %36, %39 : vector<16x1xf32>
      %41 = math.rsqrt %40 : vector<16x1xf32>
      %42 = vector.broadcast %41 : vector<16x1xf32> to vector<16x256xf32>
      %43 = arith.mulf %38, %42 : vector<16x256xf32>
      %44 = vector.broadcast %24 : vector<1x256xf32> to vector<16x256xf32>
      %45 = arith.mulf %43, %44 : vector<16x256xf32>
      %46 = vector.broadcast %25 : vector<1x256xf32> to vector<16x256xf32>
      %47 = arith.addf %45, %46 : vector<16x256xf32>
      %c0_27 = arith.constant 0 : index
      %c0_28 = arith.constant 0 : index
      %48 = vector.load %arg9[%c0_27, %c0_28] : memref<16x256xf32, #tpu.memory_space<vmem>>, vector<16x256xf32>
      tpu.vector_store %arg9[%c0_27, %c0_28], %47 {strides = array<i32>} : memref<16x256xf32, #tpu.memory_space<vmem>>, vector<16x256xf32>,
      %cst_29 = arith.constant 0.000000e+00 : f32
      %49 = vector.broadcast %cst_29 : f32 to vector<16x256xf32>
      %c0_30 = arith.constant 0 : index
      %c0_31 = arith.constant 0 : index
      %50 = vector.load %arg10[%c0_30, %c0_31] : memref<16x256xf32, #tpu.memory_space<vmem>>, vector<16x256xf32>
      tpu.vector_store %arg10[%c0_30, %c0_31], %49 {strides = array<i32>} : memref<16x256xf32, #tpu.memory_space<vmem>>, vector<16x256xf32>,
    } else {
    }
    %c0 = arith.constant 0 : index
    %c0_1 = arith.constant 0 : index
    %3 = vector.load %arg9[%c0, %c0_1] : memref<16x256xf32, #tpu.memory_space<vmem>>, vector<16x256xf32>
    %c0_2 = arith.constant 0 : index
    %c0_3 = arith.constant 0 : index
    %4 = vector.load %arg5[%c0_2, %c0_3] : memref<256x128xf32, #tpu.memory_space<vmem>>, vector<256x128xf32>
    %cst = arith.constant dense<0.000000e+00> : vector<16x128xf32>
    %5 = tpu.matmul %3, %4, %cst {dimension_numbers = #tpu.dot_dimension_numbers<[1], [0], [0], [1], [0, 0, 1, 1], [], []>} : vector<16x256xf32>, vector<256x128xf32>, vector<16x128xf32> -> vector<16x128xf32>
    %c0_4 = arith.constant 0 : index
    %c0_5 = arith.constant 0 : index
    %6 = vector.load %arg6[%c0_4, %c0_5] : memref<256x128xf32, #tpu.memory_space<vmem>>, vector<256x128xf32>
    %cst_6 = arith.constant dense<0.000000e+00> : vector<16x128xf32>
    %7 = tpu.matmul %3, %6, %cst_6 {dimension_numbers = #tpu.dot_dimension_numbers<[1], [0], [0], [1], [0, 0, 1, 1], [], []>} : vector<16x256xf32>, vector<256x128xf32>, vector<16x128xf32> -> vector<16x128xf32>
    %8 = arith.negf %5 : vector<16x128xf32>
    %9 = math.exp %8 : vector<16x128xf32>
    %cst_7 = arith.constant 1.000000e+00 : f32
    %10 = vector.broadcast %cst_7 : f32 to vector<16x128xf32>
    %11 = arith.addf %10, %9 : vector<16x128xf32>
    %12 = arith.divf %10, %11 : vector<16x128xf32>
    %13 = arith.mulf %5, %12 : vector<16x128xf32>
    %14 = arith.mulf %13, %7 : vector<16x128xf32>
    %c0_8 = arith.constant 0 : index
    %c0_9 = arith.constant 0 : index
    %15 = vector.load %arg10[%c0_8, %c0_9] : memref<16x256xf32, #tpu.memory_space<vmem>>, vector<16x256xf32>
    %c0_10 = arith.constant 0 : index
    %c0_11 = arith.constant 0 : index
    %16 = vector.load %arg7[%c0_10, %c0_11] : memref<128x256xf32, #tpu.memory_space<vmem>>, vector<128x256xf32>
    %cst_12 = arith.constant dense<0.000000e+00> : vector<16x256xf32>
    %17 = tpu.matmul %14, %16, %cst_12 {dimension_numbers = #tpu.dot_dimension_numbers<[1], [0], [0], [1], [0, 0, 1, 1], [], []>} : vector<16x128xf32>, vector<128x256xf32>, vector<16x256xf32> -> vector<16x256xf32>
    %18 = arith.addf %15, %17 : vector<16x256xf32>
    %c0_13 = arith.constant 0 : index
    %c0_14 = arith.constant 0 : index
    %19 = vector.load %arg10[%c0_13, %c0_14] : memref<16x256xf32, #tpu.memory_space<vmem>>, vector<16x256xf32>
    tpu.vector_store %arg10[%c0_13, %c0_14], %18 {strides = array<i32>} : memref<16x256xf32, #tpu.memory_space<vmem>>, vector<16x256xf32>,
    %c1_i32 = arith.constant 1 : i32
    %20 = arith.cmpi eq, %arg1, %c1_i32 : i32
    %21 = arith.extui %20 : i1 to i32
    %c0_i32_15 = arith.constant 0 : i32
    %22 = arith.cmpi ne, %21, %c0_i32_15 : i32
    scf.if %22 {
      %c0_16 = arith.constant 0 : index
      %c0_17 = arith.constant 0 : index
      %23 = vector.load %arg2[%c0_16, %c0_17] : memref<16x256xf32, #tpu.memory_space<vmem>>, vector<16x256xf32>
      %c0_18 = arith.constant 0 : index
      %c0_19 = arith.constant 0 : index
      %24 = vector.load %arg10[%c0_18, %c0_19] : memref<16x256xf32, #tpu.memory_space<vmem>>, vector<16x256xf32>
      %25 = arith.addf %23, %24 : vector<16x256xf32>
      %c0_20 = arith.constant 0 : index
      %c0_21 = arith.constant 0 : index
      %26 = vector.load %arg8[%c0_20, %c0_21] : memref<16x256xf32, #tpu.memory_space<vmem>>, vector<16x256xf32>
      tpu.vector_store %arg8[%c0_20, %c0_21], %25 {strides = array<i32>} : memref<16x256xf32, #tpu.memory_space<vmem>>, vector<16x256xf32>,
    } else {
    }
    return
  }
  func.func @transform_0(%arg0: i32, %arg1: i32) -> (i32, i32) {
    %c0_i32 = arith.constant 0 : i32
    %c0_i32_0 = arith.constant 0 : i32
    return %arg0, %c0_i32 : i32, i32
  }
  func.func @transform_1(%arg0: i32, %arg1: i32) -> (i32, i32) {
    %c0_i32 = arith.constant 0 : i32
    %c0_i32_0 = arith.constant 0 : i32
    %c0_i32_1 = arith.constant 0 : i32
    return %c0_i32, %c0_i32_0 : i32, i32
  }
  func.func @transform_2(%arg0: i32, %arg1: i32) -> (i32, i32) {
    %c0_i32 = arith.constant 0 : i32
    %c0_i32_0 = arith.constant 0 : i32
    %c0_i32_1 = arith.constant 0 : i32
    return %c0_i32, %c0_i32_0 : i32, i32
  }
  func.func @transform_3(%arg0: i32, %arg1: i32) -> (i32, i32) {
    %c0_i32 = arith.constant 0 : i32
    %c0_i32_0 = arith.constant 0 : i32
    return %c0_i32, %arg1 : i32, i32
  }
  func.func @transform_4(%arg0: i32, %arg1: i32) -> (i32, i32) {
    %c0_i32 = arith.constant 0 : i32
    %c0_i32_0 = arith.constant 0 : i32
    return %c0_i32, %arg1 : i32, i32
  }
  func.func @transform_5(%arg0: i32, %arg1: i32) -> (i32, i32) {
    %c0_i32 = arith.constant 0 : i32
    %c0_i32_0 = arith.constant 0 : i32
    return %arg1, %c0_i32 : i32, i32
  }
  func.func @transform_6(%arg0: i32, %arg1: i32) -> (i32, i32) {
    %c0_i32 = arith.constant 0 : i32
    %c0_i32_0 = arith.constant 0 : i32
    return %arg0, %c0_i32 : i32, i32
  }
}

</mosaic_0001>

<llo_original>
// kernel: encoder_forward.3
$region0: #{encoder_forward.3}
  #allocation0 [shape = 'u32[]', space=smem, size = 0x4, offset = 0x4, fixed_abs, tag = 'smem constant byte address 0x4 - core index']
  #allocation1 [shape = 'u32[144,128]{1,0:T(1,128)}', space=vmem, size = 0x12000, scoped, tag = 'internal scratch']
  %s0 = inlined_call_operand.hbm [shape: f32[16,128], index: 0, kind: input, shape index: {}]
  %s1 = inlined_call_operand.hbm [shape: f32[128,256], index: 1, kind: input, shape index: {}]
  %s2 = inlined_call_operand.vmem [shape: f32[1,256], index: 2, kind: input, shape index: {}]
  %s3 = inlined_call_operand.vmem [shape: f32[1,256], index: 3, kind: input, shape index: {}]
  %s4 = inlined_call_operand.vmem [shape: f32[16,256], index: 4, kind: output, shape index: {}]
  %s5 = sld [smem:[#allocation0]]
  $region34: #{encoder_forward.3} parent=0
    _
  %s7 = ssub.s32 1, %s5
  %s8 = scalar_select 0, %s7, %s5
  $region1: #{encoder_forward.3} parent=0
    #allocation2 [shape = 'u8[8192]{0}', space=vmem, size = 0x2000, scoped, tag = 'input window, operand 0, single buffered']
    #allocation3 [shape = 's32[1]{0}', space=sflag, size = 0x4, scoped, tag = 'scoped memory for encoder_forward.3']
    #allocation4 [shape = 'u8[131072]{0}', space=vmem, size = 0x20000, scoped, tag = 'input window, operand 1, single buffered']
    #allocation5 [shape = 's32[1]{0}', space=sflag, size = 0x4, scoped, tag = 'scoped memory for encoder_forward.3']
    %9 = vsyncpa [#allocation3], 0
    %10 = vsyncpa [#allocation5], 0
    // Predicated region
    $region2: #{encoder_forward.3} parent=1 // pred_check
      _
    $region3: #{encoder_forward.3} parent=1 // pred_check_branch
      %12 = sbr.rel (0) target = $region5
    $region4: #{encoder_forward.3} parent=1 // pred_region
      %s14 = ssub.s32 256, 256
      %15 = vsyncadd [#allocation3], %s14
      %s16 = sshll.u32 [#allocation2], 4
      %s17 = int_to_ptr.vmem [resolvable:$true] %s16
      %22 = dma.hbm_to_vmem [thread:$0]  %s0, 256, %s17, [#allocation3], 128, 128, 8
    $region5: #{encoder_forward.3} parent=1 // pred_fallthru
      _
    // Predicated region
    $region6: #{encoder_forward.3} parent=1 // pred_check
      _
    $region7: #{encoder_forward.3} parent=1 // pred_check_branch
      %24 = sbr.rel (0) target = $region9
    $region8: #{encoder_forward.3} parent=1 // pred_region
      %s26 = ssub.s32 4096, 4096
      %27 = vsyncadd [#allocation5], %s26
      %s28 = sshll.u32 [#allocation4], 4
      %s29 = int_to_ptr.vmem [resolvable:$true] %s28
      %34 = dma.hbm_to_vmem [thread:$0]  %s1, 4096, %s29, [#allocation5], 256, 256, 16
    $region9: #{encoder_forward.3} parent=1 // pred_fallthru
      _
    // Predicated region
    $region10: #{encoder_forward.3} parent=1 // pred_check
      _
    $region11: #{encoder_forward.3} parent=1 // pred_check_branch
      %36 = sbr.rel (0) target = $region13
    $region12: #{encoder_forward.3} parent=1 // pred_region
      _
    $region13: #{encoder_forward.3} parent=1 // pred_fallthru
      _
    // Predicated region
    $region14: #{encoder_forward.3} parent=1 // pred_check
      _
    $region15: #{encoder_forward.3} parent=1 // pred_check_branch
      %38 = sbr.rel (0) target = $region17
    $region16: #{encoder_forward.3} parent=1 // pred_region
      _
    $region17: #{encoder_forward.3} parent=1 // pred_fallthru
      _
    // Predicated region
    $region18: #{encoder_forward.3} parent=1 // pred_check
      _
    $region19: #{encoder_forward.3} parent=1 // pred_check_branch
      %40 = sbr.rel (0) target = $region21
    $region20: #{encoder_forward.3} parent=1 // pred_region
      %41 = dma.done [#allocation3], 256
    $region21: #{encoder_forward.3} parent=1 // pred_fallthru
      _
    // Predicated region
    $region22: #{encoder_forward.3} parent=1 // pred_check
      _
    $region23: #{encoder_forward.3} parent=1 // pred_check_branch
      %43 = sbr.rel (0) target = $region25
    $region24: #{encoder_forward.3} parent=1 // pred_region
      %44 = dma.done [#allocation5], 4096
    $region25: #{encoder_forward.3} parent=1 // pred_fallthru
      _
    %v45 = vld [vmem:[#allocation2] sm:$0xff]
    %v46 = vld [vmem:[#allocation2 + $0x8] sm:$0xff]
    %v47 = vld [vmem:[#allocation4] sm:$0xff]
    %v48 = vld [vmem:[#allocation4 + $0x8] sm:$0xff]
    %v49 = vld [vmem:[#allocation4 + $0x10] sm:$0xff]
    %v50 = vld [vmem:[#allocation4 + $0x18] sm:$0xff]
    %v51 = vld [vmem:[#allocation4 + $0x20] sm:$0xff]
    %v52 = vld [vmem:[#allocation4 + $0x28] sm:$0xff]
    %v53 = vld [vmem:[#allocation4 + $0x30] sm:$0xff]
    %v54 = vld [vmem:[#allocation4 + $0x38] sm:$0xff]
    %v55 = vld [vmem:[#allocation4 + $0x40] sm:$0xff]
    %v56 = vld [vmem:[#allocation4 + $0x48] sm:$0xff]
    %v57 = vld [vmem:[#allocation4 + $0x50] sm:$0xff]
    %v58 = vld [vmem:[#allocation4 + $0x58] sm:$0xff]
    %v59 = vld [vmem:[#allocation4 + $0x60] sm:$0xff]
    %v60 = vld [vmem:[#allocation4 + $0x68] sm:$0xff]
    %v61 = vld [vmem:[#allocation4 + $0x70] sm:$0xff]
    %v62 = vld [vmem:[#allocation4 + $0x78] sm:$0xff]
    %v63 = vld [vmem:[#allocation4 + $0x80] sm:$0xff]
    %v64 = vld [vmem:[#allocation4 + $0x88] sm:$0xff]
    %v65 = vld [vmem:[#allocation4 + $0x90] sm:$0xff]
    %v66 = vld [vmem:[#allocation4 + $0x98] sm:$0xff]
    %v67 = vld [vmem:[#allocation4 + $0xa0] sm:$0xff]
    %v68 = vld [vmem:[#allocation4 + $0xa8] sm:$0xff]
    %v69 = vld [vmem:[#allocation4 + $0xb0] sm:$0xff]
    %v70 = vld [vmem:[#allocation4 + $0xb8] sm:$0xff]
    %v71 = vld [vmem:[#allocation4 + $0xc0] sm:$0xff]
    %v72 = vld [vmem:[#allocation4 + $0xc8] sm:$0xff]
    %v73 = vld [vmem:[#allocation4 + $0xd0] sm:$0xff]
    %v74 = vld [vmem:[#allocation4 + $0xd8] sm:$0xff]
    %v75 = vld [vmem:[#allocation4 + $0xe0] sm:$0xff]
    %v76 = vld [vmem:[#allocation4 + $0xe8] sm:$0xff]
    %v77 = vld [vmem:[#allocation4 + $0xf0] sm:$0xff]
    %v78 = vld [vmem:[#allocation4 + $0xf8] sm:$0xff]
    %79 = vmatprep.subr.mxu0 %v78
    %80 = vmatpush1.msra.mxu0 %v77
    %81 = vmatprep.subr.mxu0 %v76
    %82 = vmatpush1.msra.mxu0 %v75
    %83 = vmatprep.subr.mxu0 %v74
    %84 = vmatpush1.msra.mxu0 %v73
    %85 = vmatprep.subr.mxu0 %v72
    %86 = vmatpush1.msra.mxu0 %v71
    %87 = vmatprep.subr.mxu0 %v70
    %88 = vmatpush1.msra.mxu0 %v69
    %89 = vmatprep.subr.mxu0 %v68
    %90 = vmatpush1.msra.mxu0 %v67
    %91 = vmatprep.subr.mxu0 %v66
    %92 = vmatpush1.msra.mxu0 %v65
    %93 = vmatprep.subr.mxu0 %v64
    %94 = vmatpush1.msra.mxu0 %v63
    %95 = vmatprep.subr.mxu0 %v62
    %96 = vmatpush1.msra.mxu0 %v61
    %97 = vmatprep.subr.mxu0 %v60
    %98 = vmatpush1.msra.mxu0 %v59
    %99 = vmatprep.subr.mxu0 %v58
    %100 = vmatpush1.msra.mxu0 %v57
    %101 = vmatprep.subr.mxu0 %v56
    %102 = vmatpush1.msra.mxu0 %v55
    %103 = vmatprep.subr.mxu0 %v54
    %104 = vmatpush1.msra.mxu0 %v53
    %105 = vmatprep.subr.mxu0 %v52
    %106 = vmatpush1.msra.mxu0 %v51
    %107 = vmatprep.subr.mxu0 %v50
    %108 = vmatpush1.msra.mxu0 %v49
    %109 = vmatprep.subr.mxu0 %v48
    %110 = vmatpush1.msra.mxu0 %v47
    %111 = vmatprep.subr.mxu0 0.0
    %112 = vmatpush2.msra.mxu0 0.0
    %113 = vmatprep.subr.mxu0 0.0
    %114 = vmatpush2.msra.mxu0 0.0
    %115 = vmatprep.subr.mxu0 0.0
    %116 = vmatpush2.msra.mxu0 0.0
    %117 = vmatprep.subr.mxu0 0.0
    %118 = vmatpush2.msra.mxu0 0.0
    %119 = vmatprep.subr.mxu0 0.0
    %120 = vmatpush2.msra.mxu0 0.0
    %121 = vmatprep.subr.mxu0 0.0
    %122 = vmatpush2.msra.mxu0 0.0
    %123 = vmatprep.subr.mxu0 0.0
    %124 = vmatpush2.msra.mxu0 0.0
    %125 = vmatprep.subr.mxu0 0.0
    %126 = vmatpush2.msra.mxu0 0.0
    %127 = vmatprep.subr.mxu0 0.0
    %128 = vmatpush2.msra.mxu0 0.0
    %129 = vmatprep.subr.mxu0 0.0
    %130 = vmatpush2.msra.mxu0 0.0
    %131 = vmatprep.subr.mxu0 0.0
    %132 = vmatpush2.msra.mxu0 0.0
    %133 = vmatprep.subr.mxu0 0.0
    %134 = vmatpush2.msra.mxu0 0.0
    %135 = vmatprep.subr.mxu0 0.0
    %136 = vmatpush2.msra.mxu0 0.0
    %137 = vmatprep.subr.mxu0 0.0
    %138 = vmatpush2.msra.mxu0 0.0
    %139 = vmatprep.subr.mxu0 0.0
    %140 = vmatpush2.msra.mxu0 0.0
    %141 = vmatprep.subr.mxu0 0.0
    %142 = vmatpush2.msra.mxu0 0.0
    %143 = vmatprep.mubr.f32.mxu0 0.0
    %144 = vmatmul.mubr.f32.gmra.mxu0 %v45
    %v145 = vpop.f32.mrf.mxu0
    %v146 = vadd.f32 0.0, %v145
    %v147 = vpop.f32.mrf.mxu0
    %v148 = vadd.f32 0.0, %v147
    %149 = vmatprep.mubr.f32.mxu0 0.0
    %150 = vmatmul.mubr.f32.gmra.mxu0 %v46
    %v151 = vpop.f32.mrf.mxu0
    %v152 = vadd.f32 0.0, %v151
    %v153 = vpop.f32.mrf.mxu0
    %v154 = vadd.f32 0.0, %v153
    %155 = vdwg.mxu0
    %v156 = vmul.f32 %v146, 0.5
    %v157 = vmul.f32 %v148, 0.5
    %v158 = vmul.f32 %v152, 0.5
    %v159 = vmul.f32 %v154, 0.5
    %v160 = vmul.f32 %v146, 0.70710677
    %v161 = vmul.f32 %v148, 0.70710677
    %v162 = vmul.f32 %v152, 0.70710677
    %v163 = vmul.f32 %v154, 0.70710677
    %vm164 = vcmp.ge.f32.partialorder %v160, 0.0
    %vm165 = vcmp.ge.f32.partialorder %v161, 0.0
    %vm166 = vcmp.ge.f32.partialorder %v162, 0.0
    %vm167 = vcmp.ge.f32.partialorder %v163, 0.0
    %v168 = vsel %vm164, 1.0, -1.0
    %v169 = vsel %vm165, 1.0, -1.0
    %v170 = vsel %vm166, 1.0, -1.0
    %v171 = vsel %vm167, 1.0, -1.0
    %v172 = vand.u32 2147483647, %v160
    %v173 = vand.u32 2147483647, %v161
    %v174 = vand.u32 2147483647, %v162
    %v175 = vand.u32 2147483647, %v163
    %v176 = vmul.f32 %v172, 0.3275911
    %v177 = vmul.f32 %v173, 0.3275911
    %v178 = vmul.f32 %v174, 0.3275911
    %v179 = vmul.f32 %v175, 0.3275911
    %v180 = vadd.f32 %v176, 1.0
    %v181 = vadd.f32 %v177, 1.0
    %v182 = vadd.f32 %v178, 1.0
    %v183 = vadd.f32 %v179, 1.0
    %v184 = vrcp.pop %v180
    %v185 = vmul.f32 1.0, %v184
    %v186 = vrcp.pop %v181
    %v187 = vmul.f32 1.0, %v186
    %v188 = vrcp.pop %v182
    %v189 = vmul.f32 1.0, %v188
    %v190 = vrcp.pop %v183
    %v191 = vmul.f32 1.0, %v190
    %v192 = vmul.f32 %v185, 1.0614054
    %v193 = vmul.f32 %v187, 1.0614054
    %v194 = vmul.f32 %v189, 1.0614054
    %v195 = vmul.f32 %v191, 1.0614054
    %v196 = vadd.f32 %v192, -1.4531521
    %v197 = vadd.f32 %v193, -1.4531521
    %v198 = vadd.f32 %v194, -1.4531521
    %v199 = vadd.f32 %v195, -1.4531521
    %v200 = vmul.f32 %v196, %v185
    %v201 = vmul.f32 %v197, %v187
    %v202 = vmul.f32 %v198, %v189
    %v203 = vmul.f32 %v199, %v191
    %v204 = vadd.f32 %v200, 1.4214138
    %v205 = vadd.f32 %v201, 1.4214138
    %v206 = vadd.f32 %v202, 1.4214138
    %v207 = vadd.f32 %v203, 1.4214138
    %v208 = vmul.f32 %v204, %v185
    %v209 = vmul.f32 %v205, %v187
    %v210 = vmul.f32 %v206, %v189
    %v211 = vmul.f32 %v207, %v191
    %v212 = vadd.f32 %v208, -0.28449672
    %v213 = vadd.f32 %v209, -0.28449672
    %v214 = vadd.f32 %v210, -0.28449672
    %v215 = vadd.f32 %v211, -0.28449672
    %v216 = vmul.f32 %v212, %v185
    %v217 = vmul.f32 %v213, %v187
    %v218 = vmul.f32 %v214, %v189
    %v219 = vmul.f32 %v215, %v191
    %v220 = vadd.f32 %v216, 0.2548296
    %v221 = vadd.f32 %v217, 0.2548296
    %v222 = vadd.f32 %v218, 0.2548296
    %v223 = vadd.f32 %v219, 0.2548296
    %v224 = vmul.f32 %v220, %v185
    %v225 = vmul.f32 %v221, %v187
    %v226 = vmul.f32 %v222, %v189
    %v227 = vmul.f32 %v223, %v191
    %v228 = vsub.f32 0.0, %v172
    %v229 = vsub.f32 0.0, %v173
    %v230 = vsub.f32 0.0, %v174
    %v231 = vsub.f32 0.0, %v175
    %v232 = vmul.f32 %v228, %v172
    %v233 = vmul.f32 %v229, %v173
    %v234 = vmul.f32 %v230, %v174
    %v235 = vmul.f32 %v231, %v175
    %v236 = vmul.f32 %v232, 1.442695
    %v237 = vpow.pop %v236
    %v238 = vmul.f32 %v233, 1.442695
    %v239 = vpow.pop %v238
    %v240 = vmul.f32 %v234, 1.442695
    %v241 = vpow.pop %v240
    %v242 = vmul.f32 %v235, 1.442695
    %v243 = vpow.pop %v242
    %v244 = vmul.f32 %v224, %v237
    %v245 = vmul.f32 %v225, %v239
    %v246 = vmul.f32 %v226, %v241
    %v247 = vmul.f32 %v227, %v243
    %v248 = vsub.f32 1.0, %v244
    %v249 = vsub.f32 1.0, %v245
    %v250 = vsub.f32 1.0, %v246
    %v251 = vsub.f32 1.0, %v247
    %v252 = vmul.f32 %v168, %v248
    %v253 = vmul.f32 %v169, %v249
    %v254 = vmul.f32 %v170, %v250
    %v255 = vmul.f32 %v171, %v251
    %v256 = vadd.f32 %v252, 1.0
    %v257 = vadd.f32 %v253, 1.0
    %v258 = vadd.f32 %v254, 1.0
    %v259 = vadd.f32 %v255, 1.0
    %v260 = vmul.f32 %v156, %v256
    %v261 = vmul.f32 %v157, %v257
    %v262 = vmul.f32 %v158, %v258
    %v263 = vmul.f32 %v159, %v259
    %v264 = vld [vmem:[%s2] sm:$0x3]
    %v265 = vld [vmem:[%s3] sm:$0x3]
    %v266 = vadd.f32 %v260, %v261
    %267 = vadd.xlane.f32.xlu0 %v266
    %v268 = vpop.xlane.xlu0 %267
    %v269 = vadd.f32 %v262, %v263
    %270 = vadd.xlane.f32.xlu0 %v269
    %v271 = vpop.xlane.xlu0 %270
    %v272 = vrcp.pop 256.0
    %v273 = vmul.f32 %v268, %v272
    %v274 = vmul.f32 %v271, %v272
    %v275 = vsub.f32 %v260, %v273
    %v276 = vsub.f32 %v261, %v273
    %v277 = vsub.f32 %v262, %v274
    %v278 = vsub.f32 %v263, %v274
    %v279 = vmul.f32 %v275, %v275
    %v280 = vmul.f32 %v276, %v276
    %v281 = vmul.f32 %v277, %v277
    %v282 = vmul.f32 %v278, %v278
    %v283 = vadd.f32 %v279, %v280
    %284 = vadd.xlane.f32.xlu0 %v283
    %v285 = vpop.xlane.xlu0 %284
    %v286 = vadd.f32 %v281, %v282
    %287 = vadd.xlane.f32.xlu0 %v286
    %v288 = vpop.xlane.xlu0 %287
    %v289 = vmul.f32 %v285, %v272
    %v290 = vmul.f32 %v288, %v272
    %v291 = vadd.f32 %v289, 1e-05
    %v292 = vadd.f32 %v290, 1e-05
    %v293 = vrsqrt.pop %v291
    %v294 = vrsqrt.pop %v292
    %v295 = vmul.f32 %v275, %v293
    %v296 = vmul.f32 %v276, %v293
    %v297 = vmul.f32 %v277, %v294
    %v298 = vmul.f32 %v278, %v294
    %v300 = vlaneseq
    %v301 = vshrl.u32 %v300, 7
    %v302 = vsub.s32 0, %v301
    %v303 = vrot.slane %v264, %v302
    %v304 = vlaneseq
    %v305 = vshrl.u32 %v304, 7
    %v306 = vsub.s32 1, %v305
    %v307 = vrot.slane %v264, %v306
    %v310 = vmul.f32 %v295, %v303
    %v311 = vmul.f32 %v296, %v307
    %v312 = vmul.f32 %v297, %v303
    %v313 = vmul.f32 %v298, %v307
    %v315 = vlaneseq
    %v316 = vshrl.u32 %v315, 7
    %v317 = vsub.s32 0, %v316
    %v318 = vrot.slane %v265, %v317
    %v319 = vlaneseq
    %v320 = vshrl.u32 %v319, 7
    %v321 = vsub.s32 1, %v320
    %v322 = vrot.slane %v265, %v321
    %v325 = vadd.f32 %v310, %v318
    %v326 = vadd.f32 %v311, %v322
    %v327 = vadd.f32 %v312, %v318
    %v328 = vadd.f32 %v313, %v322
    %329 = vst [vmem:[%s4] sm:$0xff] %v325
    %330 = vst [vmem:[%s4 + $0x8] sm:$0xff] %v326
    %331 = vst [vmem:[%s4 + $0x10] sm:$0xff] %v327
    %332 = vst [vmem:[%s4 + $0x18] sm:$0xff] %v328
    // Predicated region
    $region26: #{encoder_forward.3} parent=1 // pred_check
      _
    $region27: #{encoder_forward.3} parent=1 // pred_check_branch
      %334 = sbr.rel (0) target = $region29
    $region28: #{encoder_forward.3} parent=1 // pred_region
      _
    $region29: #{encoder_forward.3} parent=1 // pred_fallthru
      _
    // Predicated region
    $region30: #{encoder_forward.3} parent=1 // pred_check
      _
    $region31: #{encoder_forward.3} parent=1 // pred_check_branch
      %336 = sbr.rel (0) target = $region33
    $region32: #{encoder_forward.3} parent=1 // pred_region
      _
    $region33: #{encoder_forward.3} parent=1 // pred_fallthru
      _
    %337 = vsyncpa [#allocation3], 1
    %338 = vsyncpa [#allocation5], 1

// kernel: encoder_forward.5
$region0: #{encoder_forward.5}
  #allocation0 [shape = 'u32[]', space=smem, size = 0x4, offset = 0x4, fixed_abs, tag = 'smem constant byte address 0x4 - core index']
  #allocation1 [shape = 'u32[144,128]{1,0:T(1,128)}', space=vmem, size = 0x12000, scoped, tag = 'internal scratch']
  %s0 = inlined_call_operand.vmem [shape: f32[16,256], index: 0, kind: input, shape index: {}]
  %s1 = inlined_call_operand.vmem [shape: f32[256,128], index: 1, kind: input, shape index: {}]
  %s2 = inlined_call_operand.hbm [shape: f32[16,128], index: 2, kind: output, shape index: {}]
  %s3 = sld [smem:[#allocation0]]
  $region18: #{encoder_forward.5} parent=0
    _
  %s5 = ssub.s32 1, %s3
  %s6 = scalar_select 0, %s5, %s3
  $region1: #{encoder_forward.5} parent=0
    #allocation2 [shape = 'u8[8192]{0}', space=vmem, size = 0x2000, scoped, tag = 'output window, operand 0, single buffered']
    #allocation3 [shape = 's32[1]{0}', space=sflag, size = 0x4, scoped, tag = 'scoped memory for encoder_forward.5']
    %7 = vsyncpa [#allocation3], 0
    // Predicated region
    $region2: #{encoder_forward.5} parent=1 // pred_check
      _
    $region3: #{encoder_forward.5} parent=1 // pred_check_branch
      %9 = sbr.rel (0) target = $region5
    $region4: #{encoder_forward.5} parent=1 // pred_region
      _
    $region5: #{encoder_forward.5} parent=1 // pred_fallthru
      _
    // Predicated region
    $region6: #{encoder_forward.5} parent=1 // pred_check
      _
    $region7: #{encoder_forward.5} parent=1 // pred_check_branch
      %11 = sbr.rel (0) target = $region9
    $region8: #{encoder_forward.5} parent=1 // pred_region
      _
    $region9: #{encoder_forward.5} parent=1 // pred_fallthru
      _
    %v12 = vld [vmem:[%s0] sm:$0xff]
    %v13 = vld [vmem:[%s0 + $0x8] sm:$0xff]
    %v14 = vld [vmem:[%s0 + $0x10] sm:$0xff]
    %v15 = vld [vmem:[%s0 + $0x18] sm:$0xff]
    %v16 = vld [vmem:[%s1] sm:$0xff]
    %v17 = vld [vmem:[%s1 + $0x8] sm:$0xff]
    %v18 = vld [vmem:[%s1 + $0x10] sm:$0xff]
    %v19 = vld [vmem:[%s1 + $0x18] sm:$0xff]
    %v20 = vld [vmem:[%s1 + $0x20] sm:$0xff]
    %v21 = vld [vmem:[%s1 + $0x28] sm:$0xff]
    %v22 = vld [vmem:[%s1 + $0x30] sm:$0xff]
    %v23 = vld [vmem:[%s1 + $0x38] sm:$0xff]
    %v24 = vld [vmem:[%s1 + $0x40] sm:$0xff]
    %v25 = vld [vmem:[%s1 + $0x48] sm:$0xff]
    %v26 = vld [vmem:[%s1 + $0x50] sm:$0xff]
    %v27 = vld [vmem:[%s1 + $0x58] sm:$0xff]
    %v28 = vld [vmem:[%s1 + $0x60] sm:$0xff]
    %v29 = vld [vmem:[%s1 + $0x68] sm:$0xff]
    %v30 = vld [vmem:[%s1 + $0x70] sm:$0xff]
    %v31 = vld [vmem:[%s1 + $0x78] sm:$0xff]
    %v32 = vld [vmem:[%s1 + $0x80] sm:$0xff]
    %v33 = vld [vmem:[%s1 + $0x88] sm:$0xff]
    %v34 = vld [vmem:[%s1 + $0x90] sm:$0xff]
    %v35 = vld [vmem:[%s1 + $0x98] sm:$0xff]
    %v36 = vld [vmem:[%s1 + $0xa0] sm:$0xff]
    %v37 = vld [vmem:[%s1 + $0xa8] sm:$0xff]
    %v38 = vld [vmem:[%s1 + $0xb0] sm:$0xff]
    %v39 = vld [vmem:[%s1 + $0xb8] sm:$0xff]
    %v40 = vld [vmem:[%s1 + $0xc0] sm:$0xff]
    %v41 = vld [vmem:[%s1 + $0xc8] sm:$0xff]
    %v42 = vld [vmem:[%s1 + $0xd0] sm:$0xff]
    %v43 = vld [vmem:[%s1 + $0xd8] sm:$0xff]
    %v44 = vld [vmem:[%s1 + $0xe0] sm:$0xff]
    %v45 = vld [vmem:[%s1 + $0xe8] sm:$0xff]
    %v46 = vld [vmem:[%s1 + $0xf0] sm:$0xff]
    %v47 = vld [vmem:[%s1 + $0xf8] sm:$0xff]
    %48 = vmatprep.subr.mxu0 0.0
    %49 = vmatpush1.msra.mxu0 %v31
    %50 = vmatprep.subr.mxu0 0.0
    %51 = vmatpush1.msra.mxu0 %v30
    %52 = vmatprep.subr.mxu0 0.0
    %53 = vmatpush1.msra.mxu0 %v29
    %54 = vmatprep.subr.mxu0 0.0
    %55 = vmatpush1.msra.mxu0 %v28
    %56 = vmatprep.subr.mxu0 0.0
    %57 = vmatpush1.msra.mxu0 %v27
    %58 = vmatprep.subr.mxu0 0.0
    %59 = vmatpush1.msra.mxu0 %v26
    %60 = vmatprep.subr.mxu0 0.0
    %61 = vmatpush1.msra.mxu0 %v25
    %62 = vmatprep.subr.mxu0 0.0
    %63 = vmatpush1.msra.mxu0 %v24
    %64 = vmatprep.subr.mxu0 0.0
    %65 = vmatpush1.msra.mxu0 %v23
    %66 = vmatprep.subr.mxu0 0.0
    %67 = vmatpush1.msra.mxu0 %v22
    %68 = vmatprep.subr.mxu0 0.0
    %69 = vmatpush1.msra.mxu0 %v21
    %70 = vmatprep.subr.mxu0 0.0
    %71 = vmatpush1.msra.mxu0 %v20
    %72 = vmatprep.subr.mxu0 0.0
    %73 = vmatpush1.msra.mxu0 %v19
    %74 = vmatprep.subr.mxu0 0.0
    %75 = vmatpush1.msra.mxu0 %v18
    %76 = vmatprep.subr.mxu0 0.0
    %77 = vmatpush1.msra.mxu0 %v17
    %78 = vmatprep.subr.mxu0 0.0
    %79 = vmatpush1.msra.mxu0 %v16
    %80 = vmatprep.subr.mxu0 0.0
    %81 = vmatpush2.msra.mxu0 %v47
    %82 = vmatprep.subr.mxu0 0.0
    %83 = vmatpush2.msra.mxu0 %v46
    %84 = vmatprep.subr.mxu0 0.0
    %85 = vmatpush2.msra.mxu0 %v45
    %86 = vmatprep.subr.mxu0 0.0
    %87 = vmatpush2.msra.mxu0 %v44
    %88 = vmatprep.subr.mxu0 0.0
    %89 = vmatpush2.msra.mxu0 %v43
    %90 = vmatprep.subr.mxu0 0.0
    %91 = vmatpush2.msra.mxu0 %v42
    %92 = vmatprep.subr.mxu0 0.0
    %93 = vmatpush2.msra.mxu0 %v41
    %94 = vmatprep.subr.mxu0 0.0
    %95 = vmatpush2.msra.mxu0 %v40
    %96 = vmatprep.subr.mxu0 0.0
    %97 = vmatpush2.msra.mxu0 %v39
    %98 = vmatprep.subr.mxu0 0.0
    %99 = vmatpush2.msra.mxu0 %v38
    %100 = vmatprep.subr.mxu0 0.0
    %101 = vmatpush2.msra.mxu0 %v37
    %102 = vmatprep.subr.mxu0 0.0
    %103 = vmatpush2.msra.mxu0 %v36
    %104 = vmatprep.subr.mxu0 0.0
    %105 = vmatpush2.msra.mxu0 %v35
    %106 = vmatprep.subr.mxu0 0.0
    %107 = vmatpush2.msra.mxu0 %v34
    %108 = vmatprep.subr.mxu0 0.0
    %109 = vmatpush2.msra.mxu0 %v33
    %110 = vmatprep.subr.mxu0 0.0
    %111 = vmatpush2.msra.mxu0 %v32
    %112 = vmatprep.mubr.f32.mxu0 %v13
    %113 = vmatmul.mubr.f32.gmra.mxu0 %v12
    %v114 = vpop.f32.mrf.mxu0
    %v115 = vadd.f32 0.0, %v114
    %v116 = vpop.f32.mrf.mxu0
    %117 = vmatprep.mubr.f32.mxu0 %v15
    %118 = vmatmul.mubr.f32.gmra.mxu0 %v14
    %v119 = vpop.f32.mrf.mxu0
    %v120 = vadd.f32 0.0, %v119
    %v121 = vpop.f32.mrf.mxu0
    %122 = vdwg.mxu0
    %123 = vst [vmem:[#allocation2] sm:$0xff] %v115
    %124 = vst [vmem:[#allocation2 + $0x8] sm:$0xff] %v120
    // Predicated region
    $region10: #{encoder_forward.5} parent=1 // pred_check
      _
    $region11: #{encoder_forward.5} parent=1 // pred_check_branch
      %126 = sbr.rel (0) target = $region13
    $region12: #{encoder_forward.5} parent=1 // pred_region
      %s128 = ssub.s32 256, 256
      %129 = vsyncadd [#allocation3], %s128
      %s130 = sshll.u32 [#allocation2], 4
      %s131 = int_to_ptr.vmem [resolvable:$true] %s130
      %136 = dma.vmem_to_hbm [thread:$0]  %s131, 256, %s2, [#allocation3], 128, 128, 8
    $region13: #{encoder_forward.5} parent=1 // pred_fallthru
      _
    // Predicated region
    $region14: #{encoder_forward.5} parent=1 // pred_check
      _
    $region15: #{encoder_forward.5} parent=1 // pred_check_branch
      %138 = sbr.rel (0) target = $region17
    $region16: #{encoder_forward.5} parent=1 // pred_region
      %139 = dma.done [#allocation3], 256
    $region17: #{encoder_forward.5} parent=1 // pred_fallthru
      _
    %140 = vsyncpa [#allocation3], 1

// kernel: encoder_forward.4
$region0: #{encoder_forward.4}
  #allocation0 [shape = 'u32[]', space=smem, size = 0x4, offset = 0x4, fixed_abs, tag = 'smem constant byte address 0x4 - core index']
  #allocation1 [shape = 'u32[144,128]{1,0:T(1,128)}', space=vmem, size = 0x12000, scoped, tag = 'internal scratch']
  #allocation2 [shape = 'f32[16,256]{1,0:T(8,128)}', space=vmem, size = 0x4000, scoped, tag = 'scratch operand']
  #allocation3 [shape = 'f32[16,256]{1,0:T(8,128)}', space=vmem, size = 0x4000, scoped, tag = 'scratch operand']
  %s0 = inlined_call_operand.vmem [shape: f32[16,256], index: 0, kind: input, shape index: {}]
  %s1 = inlined_call_operand.vmem [shape: f32[1,256], index: 1, kind: input, shape index: {}]
  %s2 = inlined_call_operand.vmem [shape: f32[1,256], index: 2, kind: input, shape index: {}]
  %s3 = inlined_call_operand.hbm [shape: f32[256,256], index: 3, kind: input, shape index: {}]
  %s4 = inlined_call_operand.hbm [shape: f32[256,256], index: 4, kind: input, shape index: {}]
  %s5 = inlined_call_operand.hbm [shape: f32[256,256], index: 5, kind: input, shape index: {}]
  %s6 = inlined_call_operand.vmem [shape: f32[16,256], index: 6, kind: output, shape index: {}]
  %s7 = sld [smem:[#allocation0]]
  $region77: #{encoder_forward.4} parent=0
    _
  %s9 = ssub.s32 1, %s7
  %s10 = scalar_select 0, %s9, %s7
  $region1: #{encoder_forward.4} parent=0
    #allocation4 [shape = 'u8[262144]{0}', space=vmem, size = 0x40000, scoped, tag = 'input window, operand 3']
    #allocation5 [shape = 's32[2]{0}', space=sflag, size = 0x8, scoped, tag = 'scoped memory for encoder_forward.4']
    #allocation6 [shape = 'u8[262144]{0}', space=vmem, size = 0x40000, scoped, tag = 'input window, operand 4']
    #allocation7 [shape = 's32[2]{0}', space=sflag, size = 0x8, scoped, tag = 'scoped memory for encoder_forward.4']
    #allocation8 [shape = 'u8[262144]{0}', space=vmem, size = 0x40000, scoped, tag = 'input window, operand 5']
    %11 = vsyncpa [#allocation5], 0
    %s12 = scalar_lea.sflag [#allocation5], 1
    %13 = vsyncpa %s12, 0
    %14 = vsyncpa [#allocation7], 0
    %s15 = scalar_lea.sflag [#allocation7], 1
    %16 = vsyncpa %s15, 0
    loop: start=0, step=1, limit=4
    $region2: #{encoder_forward.4} parent=1 // loop_pre_header
      _
    $region3: #{encoder_forward.4} parent=1 // loop_header
      %s18 = sphi 0, %s22
      %p19 = scmp.ge.s32.totalorder %s18, 4
      %s25 = sphi 0, %s37
      %s26 = sphi 0, %s33
      %s27 = sphi 0, %s25
      %s28 = sphi 0, %s26
      %s29 = sphi 0, %s27
      %s30 = sphi 0, %s28
      %s40 = sphi 0, %s42
      %s43 = sphi 0, %s40
      %s44 = sphi 0, %s43
      %s60 = sphi 0, %s44
      %s64 = sphi 0, %s64
      %s66 = sphi 0, %s64
      %s67 = sphi 0, %s66
      %s81 = sphi 0, %s67
      %s85 = sphi 0, %s85
      %s87 = sphi 0, %s85
      %s88 = sphi 0, %s87
      %s102 = sphi 0, %s88
      %s108 = sphi 0, %s110
      %s111 = sphi 0, %s108
      %s112 = sphi 0, %s111
      %s128 = sphi 0, %s112
      %s134 = sphi 0, %s136
      %s137 = sphi 0, %s134
      %s138 = sphi 0, %s137
      %s154 = sphi 0, %s138
      %s160 = sphi 0, %s162
      %s163 = sphi 0, %s160
      %s164 = sphi 0, %s163
      %s180 = sphi 0, %s164
      %s186 = sphi 0, %s188
      %s189 = sphi 0, %s186
      %s190 = sphi 0, %s189
      %s206 = sphi 0, %s190
    $region4: #{encoder_forward.4} parent=1 // loop_header_branch
      %21 = sbr.rel (%p19) target = $region8
    $region5: #{encoder_forward.4} parent=1 // loop_body
      %s23 = ssub.s32 %s18, 1
      %s24 = ssub.s32 %s18, 2
      %s31 = sadd.s32 1, %s26
      %p32 = scmp.ge.s32.totalorder %s31, 2
      %s33 = scalar_select %p32, 0, %s31
      %s34 = sadd.s32 1, %s25
      %s35 = scalar_select %p32, %s34, %s25
      %p36 = scmp.ge.s32.totalorder %s35, 1
      %s37 = scalar_select %p36, 0, %s35
      %s38 = ssub.s32 %s25, %s37
      %p39 = scmp.eq.s32.totalorder %s38, 0
      %s41 = sadd.s32 %s40, 1
      %s42 = scalar_select %p39, %s40, %s41
      %p45 = pneg %p39
      %p46 = scmp.eq.s32.totalorder %s18, 1
      %p47 = por %p45, %p46
      %p48 = scmp.ne.s32.totalorder %s40, %s43
      %p49 = scmp.eq.s32.totalorder %s18, 0
      %p50 = por %p48, %p49
      %p51 = scmp.ne.s32.totalorder %s40, %s43
      %p52 = scmp.eq.s32.totalorder %s23, 1
      %p53 = por %p51, %p52
      %p54 = scmp.ne.s32.totalorder %s43, %s44
      %p55 = scmp.eq.s32.totalorder %s23, 0
      %p56 = por %p54, %p55
      %p57 = scmp.ne.s32.totalorder %s43, %s44
      %p58 = scmp.eq.s32.totalorder %s24, 1
      %p59 = por %p57, %p58
      %p61 = scmp.ne.s32.totalorder %s44, %s60
      %p62 = scmp.eq.s32.totalorder %s24, 0
      %p63 = por %p61, %p62
      %s65 = sadd.s32 %s64, 1
      %p68 = scmp.eq.s32.totalorder %s18, 1
      %p69 = scmp.ne.s32.totalorder %s64, %s66
      %p70 = scmp.eq.s32.totalorder %s18, 0
      %p71 = por %p69, %p70
      %p72 = scmp.ne.s32.totalorder %s64, %s66
      %p73 = scmp.eq.s32.totalorder %s23, 1
      %p74 = por %p72, %p73
      %p75 = scmp.ne.s32.totalorder %s66, %s67
      %p76 = scmp.eq.s32.totalorder %s23, 0
      %p77 = por %p75, %p76
      %p78 = scmp.ne.s32.totalorder %s66, %s67
      %p79 = scmp.eq.s32.totalorder %s24, 1
      %p80 = por %p78, %p79
      %p82 = scmp.ne.s32.totalorder %s67, %s81
      %p83 = scmp.eq.s32.totalorder %s24, 0
      %p84 = por %p82, %p83
      %s86 = sadd.s32 %s85, 1
      %p89 = scmp.eq.s32.totalorder %s18, 1
      %p90 = scmp.ne.s32.totalorder %s85, %s87
      %p91 = scmp.eq.s32.totalorder %s18, 0
      %p92 = por %p90, %p91
      %p93 = scmp.ne.s32.totalorder %s85, %s87
      %p94 = scmp.eq.s32.totalorder %s23, 1
      %p95 = por %p93, %p94
      %p96 = scmp.ne.s32.totalorder %s87, %s88
      %p97 = scmp.eq.s32.totalorder %s23, 0
      %p98 = por %p96, %p97
      %p99 = scmp.ne.s32.totalorder %s87, %s88
      %p100 = scmp.eq.s32.totalorder %s24, 1
      %p101 = por %p99, %p100
      %p103 = scmp.ne.s32.totalorder %s88, %s102
      %p104 = scmp.eq.s32.totalorder %s24, 0
      %p105 = por %p103, %p104
      %s106 = ssub.s32 %s26, %s33
      %p107 = scmp.eq.s32.totalorder %s106, 0
      %s109 = sadd.s32 %s108, 1
      %s110 = scalar_select %p107, %s108, %s109
      %p113 = pneg %p107
      %p114 = scmp.eq.s32.totalorder %s18, 1
      %p115 = por %p113, %p114
      %p116 = scmp.ne.s32.totalorder %s108, %s111
      %p117 = scmp.eq.s32.totalorder %s18, 0
      %p118 = por %p116, %p117
      %p119 = scmp.ne.s32.totalorder %s108, %s111
      %p120 = scmp.eq.s32.totalorder %s23, 1
      %p121 = por %p119, %p120
      %p122 = scmp.ne.s32.totalorder %s111, %s112
      %p123 = scmp.eq.s32.totalorder %s23, 0
      %p124 = por %p122, %p123
      %p125 = scmp.ne.s32.totalorder %s111, %s112
      %p126 = scmp.eq.s32.totalorder %s24, 1
      %p127 = por %p125, %p126
      %p129 = scmp.ne.s32.totalorder %s112, %s128
      %p130 = scmp.eq.s32.totalorder %s24, 0
      %p131 = por %p129, %p130
      %s132 = ssub.s32 %s26, %s33
      %p133 = scmp.eq.s32.totalorder %s132, 0
      %s135 = sadd.s32 %s134, 1
      %s136 = scalar_select %p133, %s134, %s135
      %p139 = pneg %p133
      %p140 = scmp.eq.s32.totalorder %s18, 1
      %p141 = por %p139, %p140
      %p142 = scmp.ne.s32.totalorder %s134, %s137
      %p143 = scmp.eq.s32.totalorder %s18, 0
      %p144 = por %p142, %p143
      %p145 = scmp.ne.s32.totalorder %s134, %s137
      %p146 = scmp.eq.s32.totalorder %s23, 1
      %p147 = por %p145, %p146
      %p148 = scmp.ne.s32.totalorder %s137, %s138
      %p149 = scmp.eq.s32.totalorder %s23, 0
      %p150 = por %p148, %p149
      %p151 = scmp.ne.s32.totalorder %s137, %s138
      %p152 = scmp.eq.s32.totalorder %s24, 1
      %p153 = por %p151, %p152
      %p155 = scmp.ne.s32.totalorder %s138, %s154
      %p156 = scmp.eq.s32.totalorder %s24, 0
      %p157 = por %p155, %p156
      %s158 = ssub.s32 %s26, %s33
      %p159 = scmp.eq.s32.totalorder %s158, 0
      %s161 = sadd.s32 %s160, 1
      %s162 = scalar_select %p159, %s160, %s161
      %p165 = pneg %p159
      %p166 = scmp.eq.s32.totalorder %s18, 1
      %p167 = por %p165, %p166
      %p168 = scmp.ne.s32.totalorder %s160, %s163
      %p169 = scmp.eq.s32.totalorder %s18, 0
      %p170 = por %p168, %p169
      %p171 = scmp.ne.s32.totalorder %s160, %s163
      %p172 = scmp.eq.s32.totalorder %s23, 1
      %p173 = por %p171, %p172
      %p174 = scmp.ne.s32.totalorder %s163, %s164
      %p175 = scmp.eq.s32.totalorder %s23, 0
      %p176 = por %p174, %p175
      %p177 = scmp.ne.s32.totalorder %s163, %s164
      %p178 = scmp.eq.s32.totalorder %s24, 1
      %p179 = por %p177, %p178
      %p181 = scmp.ne.s32.totalorder %s164, %s180
      %p182 = scmp.eq.s32.totalorder %s24, 0
      %p183 = por %p181, %p182
      %s184 = ssub.s32 %s25, %s37
      %p185 = scmp.eq.s32.totalorder %s184, 0
      %s187 = sadd.s32 %s186, 1
      %s188 = scalar_select %p185, %s186, %s187
      %p191 = pneg %p185
      %p192 = scmp.eq.s32.totalorder %s18, 1
      %p193 = por %p191, %p192
      %p194 = scmp.ne.s32.totalorder %s186, %s189
      %p195 = scmp.eq.s32.totalorder %s18, 0
      %p196 = por %p194, %p195
      %p197 = scmp.ne.s32.totalorder %s186, %s189
      %p198 = scmp.eq.s32.totalorder %s23, 1
      %p199 = por %p197, %p198
      %p200 = scmp.ne.s32.totalorder %s189, %s190
      %p201 = scmp.eq.s32.totalorder %s23, 0
      %p202 = por %p200, %p201
      %p203 = scmp.ne.s32.totalorder %s189, %s190
      %p204 = scmp.eq.s32.totalorder %s24, 1
      %p205 = por %p203, %p204
      %p207 = scmp.ne.s32.totalorder %s190, %s206
      %p208 = scmp.eq.s32.totalorder %s24, 0
      %p209 = por %p207, %p208
      %p210 = scmp.le.s32.totalorder 1, %s18
      %p211 = scmp.lt.s32.totalorder %s18, 3
      %p212 = pnand %p210, %p211
      %p213 = pneg %p212
      // Predicated region
      $region9: #{encoder_forward.4} parent=5 // pred_check
        _
      $region10: #{encoder_forward.4} parent=5 // pred_check_branch
        %215 = sbr.rel (%p212) target = $region12
      $region11: #{encoder_forward.4} parent=5 // pred_region
        %s216 = ssub.s32 %s18, 1
        // Predicated region
        $region13: #{encoder_forward.4} parent=11 // pred_check
          %p217 = pneg %p56
        $region14: #{encoder_forward.4} parent=11 // pred_check_branch
          %219 = sbr.rel (%p217) target = $region16
        $region15: #{encoder_forward.4} parent=11 // pred_region
          %s220 = smul.u32 2, %s27
          %p221 = scmp.lt.s32.totalorder %s220, 1
          %s222 = scalar_select %p221, %s220, 1
          %s223 = smul.addr %s222, 2
          %s224 = smul.addr %s223, 8
          %s225 = scalar_lea.vmem %s0, %s224
          %s226 = smul.u32 2, %s27
        $region16: #{encoder_forward.4} parent=11 // pred_fallthru
          _
        // Predicated region
        $region17: #{encoder_forward.4} parent=11 // pred_check
          %p227 = pneg %p77
        $region18: #{encoder_forward.4} parent=11 // pred_check_branch
          %229 = sbr.rel (%p227) target = $region20
        $region19: #{encoder_forward.4} parent=11 // pred_region
          _
        $region20: #{encoder_forward.4} parent=11 // pred_fallthru
          _
        // Predicated region
        $region21: #{encoder_forward.4} parent=11 // pred_check
          %p230 = pneg %p98
        $region22: #{encoder_forward.4} parent=11 // pred_check_branch
          %232 = sbr.rel (%p230) target = $region24
        $region23: #{encoder_forward.4} parent=11 // pred_region
          _
        $region24: #{encoder_forward.4} parent=11 // pred_fallthru
          _
      $region12: #{encoder_forward.4} parent=5 // pred_fallthru
        _
      %p233 = scmp.lt.s32.totalorder %s18, 2
      // Predicated region
      $region25: #{encoder_forward.4} parent=5 // pred_check
        %p234 = pneg %p233
      $region26: #{encoder_forward.4} parent=5 // pred_check_branch
        %236 = sbr.rel (%p234) target = $region28
      $region27: #{encoder_forward.4} parent=5 // pred_region
        // Predicated region
        $region29: #{encoder_forward.4} parent=27 // pred_check
          %p237 = pneg %p118
        $region30: #{encoder_forward.4} parent=27 // pred_check_branch
          %239 = sbr.rel (%p237) target = $region32
        $region31: #{encoder_forward.4} parent=27 // pred_region
          %s240 = sand.u32 %s108, 1
          %s241 = scalar_lea.sflag [#allocation5], %s240
          %s242 = sand.u32 %s108, 1
          %s243 = smul.addr %s242, 256
          %s244 = scalar_lea.vmem [#allocation4], %s243
          %s246 = ssub.s32 4096, 4096
          %247 = vsyncadd %s241, %s246
          %s248 = smul.addr %s26, 128
          %s249 = scalar_lea.hbm %s3, %s248
          %s250 = sshll.u32 %s244, 4
          %s251 = int_to_ptr.vmem [resolvable:$true] %s250
          %256 = dma.hbm_to_vmem [thread:$0]  %s249, 4096, %s251, %s241, 256, 128, 8
        $region32: #{encoder_forward.4} parent=27 // pred_fallthru
          _
        // Predicated region
        $region33: #{encoder_forward.4} parent=27 // pred_check
          %p257 = pneg %p144
        $region34: #{encoder_forward.4} parent=27 // pred_check_branch
          %259 = sbr.rel (%p257) target = $region36
        $region35: #{encoder_forward.4} parent=27 // pred_region
          %s260 = sand.u32 %s18, 1
          %s261 = scalar_lea.sflag [#allocation7], %s260
          %s262 = sand.u32 %s134, 1
          %s263 = smul.addr %s262, 256
          %s264 = scalar_lea.vmem [#allocation6], %s263
          %s266 = ssub.s32 4096, 4096
          %267 = vsyncadd %s261, %s266
          %s268 = smul.addr %s26, 128
          %s269 = scalar_lea.hbm %s4, %s268
          %s270 = sshll.u32 %s264, 4
          %s271 = int_to_ptr.vmem [resolvable:$true] %s270
          %276 = dma.hbm_to_vmem [thread:$0]  %s269, 4096, %s271, %s261, 256, 128, 8
        $region36: #{encoder_forward.4} parent=27 // pred_fallthru
          _
        // Predicated region
        $region37: #{encoder_forward.4} parent=27 // pred_check
          %p277 = pneg %p170
        $region38: #{encoder_forward.4} parent=27 // pred_check_branch
          %279 = sbr.rel (%p277) target = $region40
        $region39: #{encoder_forward.4} parent=27 // pred_region
          %s280 = sand.u32 %s18, 1
          %s281 = scalar_lea.sflag [#allocation7], %s280
          %s282 = sand.u32 %s160, 1
          %s283 = smul.addr %s282, 256
          %s284 = scalar_lea.vmem [#allocation8], %s283
          %s285 = smul.u32 16, %s26
          %s287 = ssub.s32 4096, 4096
          %288 = vsyncadd %s281, %s287
          %s289 = smul.addr %s285, 2
          %s290 = smul.addr %s289, 128
          %s291 = scalar_lea.hbm %s5, %s290
          %s292 = sshll.u32 %s284, 4
          %s293 = int_to_ptr.vmem [resolvable:$true] %s292
          %298 = dma.hbm_to_vmem [thread:$0]  %s291, 4096, %s293, %s281, 256, 256, 16
        $region40: #{encoder_forward.4} parent=27 // pred_fallthru
          _
      $region28: #{encoder_forward.4} parent=5 // pred_fallthru
        _
      %p299 = scmp.le.s32.totalorder 1, %s18
      %p300 = scmp.lt.s32.totalorder %s18, 3
      %p301 = pnand %p299, %p300
      %p302 = pneg %p301
      // Predicated region
      $region41: #{encoder_forward.4} parent=5 // pred_check
        _
      $region42: #{encoder_forward.4} parent=5 // pred_check_branch
        %304 = sbr.rel (%p301) target = $region44
      $region43: #{encoder_forward.4} parent=5 // pred_region
        %s305 = ssub.s32 %s18, 1
        %s306 = sand.u32 %s111, 1
        %s307 = scalar_lea.sflag [#allocation5], %s306
        %s308 = sand.u32 %s111, 1
        %s309 = smul.addr %s308, 256
        %s310 = scalar_lea.vmem [#allocation4], %s309
        // Predicated region
        $region45: #{encoder_forward.4} parent=43 // pred_check
          %p311 = pneg %p124
        $region46: #{encoder_forward.4} parent=43 // pred_check_branch
          %313 = sbr.rel (%p311) target = $region48
        $region47: #{encoder_forward.4} parent=43 // pred_region
          %314 = dma.done %s307, 4096
        $region48: #{encoder_forward.4} parent=43 // pred_fallthru
          _
        %s315 = sand.u32 %s23, 1
        %s316 = scalar_lea.sflag [#allocation7], %s315
        %s317 = sand.u32 %s137, 1
        %s318 = smul.addr %s317, 256
        %s319 = scalar_lea.vmem [#allocation6], %s318
        // Predicated region
        $region49: #{encoder_forward.4} parent=43 // pred_check
          %p320 = pneg %p150
        $region50: #{encoder_forward.4} parent=43 // pred_check_branch
          %322 = sbr.rel (%p320) target = $region52
        $region51: #{encoder_forward.4} parent=43 // pred_region
          %323 = dma.done %s316, 4096
        $region52: #{encoder_forward.4} parent=43 // pred_fallthru
          _
        %s324 = sand.u32 %s23, 1
        %s325 = scalar_lea.sflag [#allocation7], %s324
        %s326 = sand.u32 %s163, 1
        %s327 = smul.addr %s326, 256
        %s328 = scalar_lea.vmem [#allocation8], %s327
        // Predicated region
        $region53: #{encoder_forward.4} parent=43 // pred_check
          %p329 = pneg %p176
        $region54: #{encoder_forward.4} parent=43 // pred_check_branch
          %331 = sbr.rel (%p329) target = $region56
        $region55: #{encoder_forward.4} parent=43 // pred_region
          %332 = dma.done %s325, 4096
        $region56: #{encoder_forward.4} parent=43 // pred_fallthru
          _
        %s333 = smul.u32 2, %s27
        %p334 = scmp.lt.s32.totalorder %s333, 1
        %s335 = scalar_select %p334, %s333, 1
        %s336 = smul.addr %s335, 2
        %s337 = smul.addr %s336, 8
        %s338 = scalar_lea.vmem %s0, %s337
        %p339 = pneg %p56
        %p340 = pneg %p53
        %p341 = pneg %p77
        %p342 = pneg %p74
        %p343 = pneg %p98
        %p344 = pneg %p95
        %s345 = sand.u32 %s111, 1
        %s346 = scalar_lea.sflag [#allocation5], %s345
        %s347 = sand.u32 %s111, 1
        %s348 = smul.addr %s347, 256
        %s349 = scalar_lea.vmem [#allocation4], %s348
        %p350 = pneg %p124
        %p351 = pneg %p121
        %s352 = sand.u32 %s23, 1
        %s353 = scalar_lea.sflag [#allocation7], %s352
        %s354 = sand.u32 %s137, 1
        %s355 = smul.addr %s354, 256
        %s356 = scalar_lea.vmem [#allocation6], %s355
        %p357 = pneg %p150
        %p358 = pneg %p147
        %s359 = sand.u32 %s23, 1
        %s360 = scalar_lea.sflag [#allocation7], %s359
        %s361 = sand.u32 %s163, 1
        %s362 = smul.addr %s361, 256
        %s363 = scalar_lea.vmem [#allocation8], %s362
        %p364 = pneg %p176
        %p365 = pneg %p173
        %p366 = pneg %p202
        %p367 = pneg %p199
        %s368 = smul.u32 2, %s27
        %p369 = scmp.lt.s32.totalorder %s368, 1
        %s370 = scalar_select %p369, %s368, 1
        %s371 = smul.addr %s370, 2
        %s372 = smul.addr %s371, 8
        %s373 = scalar_lea.vmem %s6, %s372
        %s374 = smul.u32 2, %s27
        %p375 = scmp.lt.s32.totalorder %s374, 1
        %s376 = scalar_select %p375, %s374, 1
        %s377 = smul.addr %s376, 2
        %s378 = smul.addr %s377, 8
        %s379 = scalar_lea.vmem %s0, %s378
        %s380 = smul.u32 2, %s27
        %s381 = smul.u32 16, %s28
        %s382 = smul.u32 2, %s27
        %p383 = scmp.lt.s32.totalorder %s382, 1
        %s384 = scalar_select %p383, %s382, 1
        %s385 = smul.addr %s384, 2
        %s386 = smul.addr %s385, 8
        %s387 = scalar_lea.vmem %s6, %s386
        %s388 = smul.u32 2, %s27
        %p389 = scmp.eq.s32.totalorder %s28, 0
        // Predicated region
        $region57: #{encoder_forward.4} parent=43 // pred_check
          %p390 = pneg %p389
        $region58: #{encoder_forward.4} parent=43 // pred_check_branch
          %392 = sbr.rel (%p390) target = $region60
        $region59: #{encoder_forward.4} parent=43 // pred_region
          %v393 = vld [vmem:[%s379] sm:$0xff]
          %v394 = vld [vmem:[%s379 + $0x8] sm:$0xff]
          %v395 = vld [vmem:[%s379 + $0x10] sm:$0xff]
          %v396 = vld [vmem:[%s379 + $0x18] sm:$0xff]
          %v397 = vld [vmem:[%s1] sm:$0x3]
          %v398 = vld [vmem:[%s2] sm:$0x3]
          %v399 = vadd.f32 %v393, %v394
          %400 = vadd.xlane.f32.xlu0 %v399
          %v401 = vpop.xlane.xlu0 %400
          %v402 = vadd.f32 %v395, %v396
          %403 = vadd.xlane.f32.xlu0 %v402
          %v404 = vpop.xlane.xlu0 %403
          %v405 = vrcp.pop 256.0
          %v406 = vmul.f32 %v401, %v405
          %v407 = vmul.f32 %v404, %v405
          %v408 = vsub.f32 %v393, %v406
          %v409 = vsub.f32 %v394, %v406
          %v410 = vsub.f32 %v395, %v407
          %v411 = vsub.f32 %v396, %v407
          %v412 = vmul.f32 %v408, %v408
          %v413 = vmul.f32 %v409, %v409
          %v414 = vmul.f32 %v410, %v410
          %v415 = vmul.f32 %v411, %v411
          %v416 = vadd.f32 %v412, %v413
          %417 = vadd.xlane.f32.xlu0 %v416
          %v418 = vpop.xlane.xlu0 %417
          %v419 = vadd.f32 %v414, %v415
          %420 = vadd.xlane.f32.xlu0 %v419
          %v421 = vpop.xlane.xlu0 %420
          %v422 = vmul.f32 %v418, %v405
          %v423 = vmul.f32 %v421, %v405
          %v424 = vadd.f32 %v422, 1e-05
          %v425 = vadd.f32 %v423, 1e-05
          %v426 = vrsqrt.pop %v424
          %v427 = vrsqrt.pop %v425
          %v428 = vmul.f32 %v408, %v426
          %v429 = vmul.f32 %v409, %v426
          %v430 = vmul.f32 %v410, %v427
          %v431 = vmul.f32 %v411, %v427
          %v433 = vlaneseq
          %v434 = vshrl.u32 %v433, 7
          %v435 = vsub.s32 0, %v434
          %v436 = vrot.slane %v397, %v435
          %v437 = vlaneseq
          %v438 = vshrl.u32 %v437, 7
          %v439 = vsub.s32 1, %v438
          %v440 = vrot.slane %v397, %v439
          %v443 = vmul.f32 %v428, %v436
          %v444 = vmul.f32 %v429, %v440
          %v445 = vmul.f32 %v430, %v436
          %v446 = vmul.f32 %v431, %v440
          %v448 = vlaneseq
          %v449 = vshrl.u32 %v448, 7
          %v450 = vsub.s32 0, %v449
          %v451 = vrot.slane %v398, %v450
          %v452 = vlaneseq
          %v453 = vshrl.u32 %v452, 7
          %v454 = vsub.s32 1, %v453
          %v455 = vrot.slane %v398, %v454
          %v458 = vadd.f32 %v443, %v451
          %v459 = vadd.f32 %v444, %v455
          %v460 = vadd.f32 %v445, %v451
          %v461 = vadd.f32 %v446, %v455
          %462 = vst [vmem:[#allocation2] sm:$0xff] %v458
          %463 = vst [vmem:[#allocation2 + $0x8] sm:$0xff] %v459
          %464 = vst [vmem:[#allocation2 + $0x10] sm:$0xff] %v460
          %465 = vst [vmem:[#allocation2 + $0x18] sm:$0xff] %v461
          %466 = vst [vmem:[#allocation3] sm:$0xff] 0.0
          %467 = vst [vmem:[#allocation3 + $0x8] sm:$0xff] 0.0
          %468 = vst [vmem:[#allocation3 + $0x10] sm:$0xff] 0.0
          %469 = vst [vmem:[#allocation3 + $0x18] sm:$0xff] 0.0
        $region60: #{encoder_forward.4} parent=43 // pred_fallthru
          _
        %v470 = vld [vmem:[#allocation2] sm:$0xff]
        %v471 = vld [vmem:[#allocation2 + $0x8] sm:$0xff]
        %v472 = vld [vmem:[#allocation2 + $0x10] sm:$0xff]
        %v473 = vld [vmem:[#allocation2 + $0x18] sm:$0xff]
        %v474 = vld [vmem:[%s310] sm:$0xff]
        %v475 = vld [vmem:[%s310 + $0x8] sm:$0xff]
        %v476 = vld [vmem:[%s310 + $0x10] sm:$0xff]
        %v477 = vld [vmem:[%s310 + $0x18] sm:$0xff]
        %v478 = vld [vmem:[%s310 + $0x20] sm:$0xff]
        %v479 = vld [vmem:[%s310 + $0x28] sm:$0xff]
        %v480 = vld [vmem:[%s310 + $0x30] sm:$0xff]
        %v481 = vld [vmem:[%s310 + $0x38] sm:$0xff]
        %v482 = vld [vmem:[%s310 + $0x40] sm:$0xff]
        %v483 = vld [vmem:[%s310 + $0x48] sm:$0xff]
        %v484 = vld [vmem:[%s310 + $0x50] sm:$0xff]
        %v485 = vld [vmem:[%s310 + $0x58] sm:$0xff]
        %v486 = vld [vmem:[%s310 + $0x60] sm:$0xff]
        %v487 = vld [vmem:[%s310 + $0x68] sm:$0xff]
        %v488 = vld [vmem:[%s310 + $0x70] sm:$0xff]
        %v489 = vld [vmem:[%s310 + $0x78] sm:$0xff]
        %v490 = vld [vmem:[%s310 + $0x80] sm:$0xff]
        %v491 = vld [vmem:[%s310 + $0x88] sm:$0xff]
        %v492 = vld [vmem:[%s310 + $0x90] sm:$0xff]
        %v493 = vld [vmem:[%s310 + $0x98] sm:$0xff]
        %v494 = vld [vmem:[%s310 + $0xa0] sm:$0xff]
        %v495 = vld [vmem:[%s310 + $0xa8] sm:$0xff]
        %v496 = vld [vmem:[%s310 + $0xb0] sm:$0xff]
        %v497 = vld [vmem:[%s310 + $0xb8] sm:$0xff]
        %v498 = vld [vmem:[%s310 + $0xc0] sm:$0xff]
        %v499 = vld [vmem:[%s310 + $0xc8] sm:$0xff]
        %v500 = vld [vmem:[%s310 + $0xd0] sm:$0xff]
        %v501 = vld [vmem:[%s310 + $0xd8] sm:$0xff]
        %v502 = vld [vmem:[%s310 + $0xe0] sm:$0xff]
        %v503 = vld [vmem:[%s310 + $0xe8] sm:$0xff]
        %v504 = vld [vmem:[%s310 + $0xf0] sm:$0xff]
        %v505 = vld [vmem:[%s310 + $0xf8] sm:$0xff]
        %506 = vmatprep.subr.mxu0 0.0
        %507 = vmatpush1.msra.mxu0 %v489
        %508 = vmatprep.subr.mxu0 0.0
        %509 = vmatpush1.msra.mxu0 %v488
        %510 = vmatprep.subr.mxu0 0.0
        %511 = vmatpush1.msra.mxu0 %v487
        %512 = vmatprep.subr.mxu0 0.0
        %513 = vmatpush1.msra.mxu0 %v486
        %514 = vmatprep.subr.mxu0 0.0
        %515 = vmatpush1.msra.mxu0 %v485
        %516 = vmatprep.subr.mxu0 0.0
        %517 = vmatpush1.msra.mxu0 %v484
        %518 = vmatprep.subr.mxu0 0.0
        %519 = vmatpush1.msra.mxu0 %v483
        %520 = vmatprep.subr.mxu0 0.0
        %521 = vmatpush1.msra.mxu0 %v482
        %522 = vmatprep.subr.mxu0 0.0
        %523 = vmatpush1.msra.mxu0 %v481
        %524 = vmatprep.subr.mxu0 0.0
        %525 = vmatpush1.msra.mxu0 %v480
        %526 = vmatprep.subr.mxu0 0.0
        %527 = vmatpush1.msra.mxu0 %v479
        %528 = vmatprep.subr.mxu0 0.0
        %529 = vmatpush1.msra.mxu0 %v478
        %530 = vmatprep.subr.mxu0 0.0
        %531 = vmatpush1.msra.mxu0 %v477
        %532 = vmatprep.subr.mxu0 0.0
        %533 = vmatpush1.msra.mxu0 %v476
        %534 = vmatprep.subr.mxu0 0.0
        %535 = vmatpush1.msra.mxu0 %v475
        %536 = vmatprep.subr.mxu0 0.0
        %537 = vmatpush1.msra.mxu0 %v474
        %538 = vmatprep.subr.mxu0 0.0
        %539 = vmatpush2.msra.mxu0 %v505
        %540 = vmatprep.subr.mxu0 0.0
        %541 = vmatpush2.msra.mxu0 %v504
        %542 = vmatprep.subr.mxu0 0.0
        %543 = vmatpush2.msra.mxu0 %v503
        %544 = vmatprep.subr.mxu0 0.0
        %545 = vmatpush2.msra.mxu0 %v502
        %546 = vmatprep.subr.mxu0 0.0
        %547 = vmatpush2.msra.mxu0 %v501
        %548 = vmatprep.subr.mxu0 0.0
        %549 = vmatpush2.msra.mxu0 %v500
        %550 = vmatprep.subr.mxu0 0.0
        %551 = vmatpush2.msra.mxu0 %v499
        %552 = vmatprep.subr.mxu0 0.0
        %553 = vmatpush2.msra.mxu0 %v498
        %554 = vmatprep.subr.mxu0 0.0
        %555 = vmatpush2.msra.mxu0 %v497
        %556 = vmatprep.subr.mxu0 0.0
        %557 = vmatpush2.msra.mxu0 %v496
        %558 = vmatprep.subr.mxu0 0.0
        %559 = vmatpush2.msra.mxu0 %v495
        %560 = vmatprep.subr.mxu0 0.0
        %561 = vmatpush2.msra.mxu0 %v494
        %562 = vmatprep.subr.mxu0 0.0
        %563 = vmatpush2.msra.mxu0 %v493
        %564 = vmatprep.subr.mxu0 0.0
        %565 = vmatpush2.msra.mxu0 %v492
        %566 = vmatprep.subr.mxu0 0.0
        %567 = vmatpush2.msra.mxu0 %v491
        %568 = vmatprep.subr.mxu0 0.0
        %569 = vmatpush2.msra.mxu0 %v490
        %570 = vmatprep.mubr.f32.mxu0 %v471
        %571 = vmatmul.mubr.f32.gmra.mxu0 %v470
        %v572 = vpop.f32.mrf.mxu0
        %v573 = vadd.f32 0.0, %v572
        %v574 = vpop.f32.mrf.mxu0
        %575 = vmatprep.mubr.f32.mxu0 %v473
        %576 = vmatmul.mubr.f32.gmra.mxu0 %v472
        %v577 = vpop.f32.mrf.mxu0
        %v578 = vadd.f32 0.0, %v577
        %v579 = vpop.f32.mrf.mxu0
        %580 = vdwg.mxu0
        %v581 = vld [vmem:[%s319] sm:$0xff]
        %v582 = vld [vmem:[%s319 + $0x8] sm:$0xff]
        %v583 = vld [vmem:[%s319 + $0x10] sm:$0xff]
        %v584 = vld [vmem:[%s319 + $0x18] sm:$0xff]
        %v585 = vld [vmem:[%s319 + $0x20] sm:$0xff]
        %v586 = vld [vmem:[%s319 + $0x28] sm:$0xff]
        %v587 = vld [vmem:[%s319 + $0x30] sm:$0xff]
        %v588 = vld [vmem:[%s319 + $0x38] sm:$0xff]
        %v589 = vld [vmem:[%s319 + $0x40] sm:$0xff]
        %v590 = vld [vmem:[%s319 + $0x48] sm:$0xff]
        %v591 = vld [vmem:[%s319 + $0x50] sm:$0xff]
        %v592 = vld [vmem:[%s319 + $0x58] sm:$0xff]
        %v593 = vld [vmem:[%s319 + $0x60] sm:$0xff]
        %v594 = vld [vmem:[%s319 + $0x68] sm:$0xff]
        %v595 = vld [vmem:[%s319 + $0x70] sm:$0xff]
        %v596 = vld [vmem:[%s319 + $0x78] sm:$0xff]
        %v597 = vld [vmem:[%s319 + $0x80] sm:$0xff]
        %v598 = vld [vmem:[%s319 + $0x88] sm:$0xff]
        %v599 = vld [vmem:[%s319 + $0x90] sm:$0xff]
        %v600 = vld [vmem:[%s319 + $0x98] sm:$0xff]
        %v601 = vld [vmem:[%s319 + $0xa0] sm:$0xff]
        %v602 = vld [vmem:[%s319 + $0xa8] sm:$0xff]
        %v603 = vld [vmem:[%s319 + $0xb0] sm:$0xff]
        %v604 = vld [vmem:[%s319 + $0xb8] sm:$0xff]
        %v605 = vld [vmem:[%s319 + $0xc0] sm:$0xff]
        %v606 = vld [vmem:[%s319 + $0xc8] sm:$0xff]
        %v607 = vld [vmem:[%s319 + $0xd0] sm:$0xff]
        %v608 = vld [vmem:[%s319 + $0xd8] sm:$0xff]
        %v609 = vld [vmem:[%s319 + $0xe0] sm:$0xff]
        %v610 = vld [vmem:[%s319 + $0xe8] sm:$0xff]
        %v611 = vld [vmem:[%s319 + $0xf0] sm:$0xff]
        %v612 = vld [vmem:[%s319 + $0xf8] sm:$0xff]
        %613 = vmatprep.subr.mxu0 0.0
        %614 = vmatpush1.msra.mxu0 %v596
        %615 = vmatprep.subr.mxu0 0.0
        %616 = vmatpush1.msra.mxu0 %v595
        %617 = vmatprep.subr.mxu0 0.0
        %618 = vmatpush1.msra.mxu0 %v594
        %619 = vmatprep.subr.mxu0 0.0
        %620 = vmatpush1.msra.mxu0 %v593
        %621 = vmatprep.subr.mxu0 0.0
        %622 = vmatpush1.msra.mxu0 %v592
        %623 = vmatprep.subr.mxu0 0.0
        %624 = vmatpush1.msra.mxu0 %v591
        %625 = vmatprep.subr.mxu0 0.0
        %626 = vmatpush1.msra.mxu0 %v590
        %627 = vmatprep.subr.mxu0 0.0
        %628 = vmatpush1.msra.mxu0 %v589
        %629 = vmatprep.subr.mxu0 0.0
        %630 = vmatpush1.msra.mxu0 %v588
        %631 = vmatprep.subr.mxu0 0.0
        %632 = vmatpush1.msra.mxu0 %v587
        %633 = vmatprep.subr.mxu0 0.0
        %634 = vmatpush1.msra.mxu0 %v586
        %635 = vmatprep.subr.mxu0 0.0
        %636 = vmatpush1.msra.mxu0 %v585
        %637 = vmatprep.subr.mxu0 0.0
        %638 = vmatpush1.msra.mxu0 %v584
        %639 = vmatprep.subr.mxu0 0.0
        %640 = vmatpush1.msra.mxu0 %v583
        %641 = vmatprep.subr.mxu0 0.0
        %642 = vmatpush1.msra.mxu0 %v582
        %643 = vmatprep.subr.mxu0 0.0
        %644 = vmatpush1.msra.mxu0 %v581
        %645 = vmatprep.subr.mxu0 0.0
        %646 = vmatpush2.msra.mxu0 %v612
        %647 = vmatprep.subr.mxu0 0.0
        %648 = vmatpush2.msra.mxu0 %v611
        %649 = vmatprep.subr.mxu0 0.0
        %650 = vmatpush2.msra.mxu0 %v610
        %651 = vmatprep.subr.mxu0 0.0
        %652 = vmatpush2.msra.mxu0 %v609
        %653 = vmatprep.subr.mxu0 0.0
        %654 = vmatpush2.msra.mxu0 %v608
        %655 = vmatprep.subr.mxu0 0.0
        %656 = vmatpush2.msra.mxu0 %v607
        %657 = vmatprep.subr.mxu0 0.0
        %658 = vmatpush2.msra.mxu0 %v606
        %659 = vmatprep.subr.mxu0 0.0
        %660 = vmatpush2.msra.mxu0 %v605
        %661 = vmatprep.subr.mxu0 0.0
        %662 = vmatpush2.msra.mxu0 %v604
        %663 = vmatprep.subr.mxu0 0.0
        %664 = vmatpush2.msra.mxu0 %v603
        %665 = vmatprep.subr.mxu0 0.0
        %666 = vmatpush2.msra.mxu0 %v602
        %667 = vmatprep.subr.mxu0 0.0
        %668 = vmatpush2.msra.mxu0 %v601
        %669 = vmatprep.subr.mxu0 0.0
        %670 = vmatpush2.msra.mxu0 %v600
        %671 = vmatprep.subr.mxu0 0.0
        %672 = vmatpush2.msra.mxu0 %v599
        %673 = vmatprep.subr.mxu0 0.0
        %674 = vmatpush2.msra.mxu0 %v598
        %675 = vmatprep.subr.mxu0 0.0
        %676 = vmatpush2.msra.mxu0 %v597
        %677 = vmatprep.mubr.f32.mxu0 %v471
        %678 = vmatmul.mubr.f32.gmra.mxu0 %v470
        %v679 = vpop.f32.mrf.mxu0
        %v680 = vadd.f32 0.0, %v679
        %v681 = vpop.f32.mrf.mxu0
        %682 = vmatprep.mubr.f32.mxu0 %v473
        %683 = vmatmul.mubr.f32.gmra.mxu0 %v472
        %v684 = vpop.f32.mrf.mxu0
        %v685 = vadd.f32 0.0, %v684
        %v686 = vpop.f32.mrf.mxu0
        %687 = vdwg.mxu0
        %v688 = vxor.u32 %v573, 2147483648
        %v689 = vxor.u32 %v578, 2147483648
        %v690 = vmul.f32 %v688, 1.442695
        %v691 = vpow.pop %v690
        %v692 = vmul.f32 %v689, 1.442695
        %v693 = vpow.pop %v692
        %v694 = vadd.f32 %v691, 1.0
        %v695 = vadd.f32 %v693, 1.0
        %v696 = vrcp.pop %v694
        %v697 = vmul.f32 1.0, %v696
        %v698 = vrcp.pop %v695
        %v699 = vmul.f32 1.0, %v698
        %v700 = vmul.f32 %v573, %v697
        %v701 = vmul.f32 %v578, %v699
        %v702 = vmul.f32 %v700, %v680
        %v703 = vmul.f32 %v701, %v685
        %v704 = vld [vmem:[#allocation3] sm:$0xff]
        %v705 = vld [vmem:[#allocation3 + $0x8] sm:$0xff]
        %v706 = vld [vmem:[#allocation3 + $0x10] sm:$0xff]
        %v707 = vld [vmem:[#allocation3 + $0x18] sm:$0xff]
        %v708 = vld [vmem:[%s328] sm:$0xff]
        %v709 = vld [vmem:[%s328 + $0x8] sm:$0xff]
        %v710 = vld [vmem:[%s328 + $0x10] sm:$0xff]
        %v711 = vld [vmem:[%s328 + $0x18] sm:$0xff]
        %v712 = vld [vmem:[%s328 + $0x20] sm:$0xff]
        %v713 = vld [vmem:[%s328 + $0x28] sm:$0xff]
        %v714 = vld [vmem:[%s328 + $0x30] sm:$0xff]
        %v715 = vld [vmem:[%s328 + $0x38] sm:$0xff]
        %v716 = vld [vmem:[%s328 + $0x40] sm:$0xff]
        %v717 = vld [vmem:[%s328 + $0x48] sm:$0xff]
        %v718 = vld [vmem:[%s328 + $0x50] sm:$0xff]
        %v719 = vld [vmem:[%s328 + $0x58] sm:$0xff]
        %v720 = vld [vmem:[%s328 + $0x60] sm:$0xff]
        %v721 = vld [vmem:[%s328 + $0x68] sm:$0xff]
        %v722 = vld [vmem:[%s328 + $0x70] sm:$0xff]
        %v723 = vld [vmem:[%s328 + $0x78] sm:$0xff]
        %v724 = vld [vmem:[%s328 + $0x80] sm:$0xff]
        %v725 = vld [vmem:[%s328 + $0x88] sm:$0xff]
        %v726 = vld [vmem:[%s328 + $0x90] sm:$0xff]
        %v727 = vld [vmem:[%s328 + $0x98] sm:$0xff]
        %v728 = vld [vmem:[%s328 + $0xa0] sm:$0xff]
        %v729 = vld [vmem:[%s328 + $0xa8] sm:$0xff]
        %v730 = vld [vmem:[%s328 + $0xb0] sm:$0xff]
        %v731 = vld [vmem:[%s328 + $0xb8] sm:$0xff]
        %v732 = vld [vmem:[%s328 + $0xc0] sm:$0xff]
        %v733 = vld [vmem:[%s328 + $0xc8] sm:$0xff]
        %v734 = vld [vmem:[%s328 + $0xd0] sm:$0xff]
        %v735 = vld [vmem:[%s328 + $0xd8] sm:$0xff]
        %v736 = vld [vmem:[%s328 + $0xe0] sm:$0xff]
        %v737 = vld [vmem:[%s328 + $0xe8] sm:$0xff]
        %v738 = vld [vmem:[%s328 + $0xf0] sm:$0xff]
        %v739 = vld [vmem:[%s328 + $0xf8] sm:$0xff]
        %740 = vmatprep.subr.mxu0 %v739
        %741 = vmatpush1.msra.mxu0 %v738
        %742 = vmatprep.subr.mxu0 %v737
        %743 = vmatpush1.msra.mxu0 %v736
        %744 = vmatprep.subr.mxu0 %v735
        %745 = vmatpush1.msra.mxu0 %v734
        %746 = vmatprep.subr.mxu0 %v733
        %747 = vmatpush1.msra.mxu0 %v732
        %748 = vmatprep.subr.mxu0 %v731
        %749 = vmatpush1.msra.mxu0 %v730
        %750 = vmatprep.subr.mxu0 %v729
        %751 = vmatpush1.msra.mxu0 %v728
        %752 = vmatprep.subr.mxu0 %v727
        %753 = vmatpush1.msra.mxu0 %v726
        %754 = vmatprep.subr.mxu0 %v725
        %755 = vmatpush1.msra.mxu0 %v724
        %756 = vmatprep.subr.mxu0 %v723
        %757 = vmatpush1.msra.mxu0 %v722
        %758 = vmatprep.subr.mxu0 %v721
        %759 = vmatpush1.msra.mxu0 %v720
        %760 = vmatprep.subr.mxu0 %v719
        %761 = vmatpush1.msra.mxu0 %v718
        %762 = vmatprep.subr.mxu0 %v717
        %763 = vmatpush1.msra.mxu0 %v716
        %764 = vmatprep.subr.mxu0 %v715
        %765 = vmatpush1.msra.mxu0 %v714
        %766 = vmatprep.subr.mxu0 %v713
        %767 = vmatpush1.msra.mxu0 %v712
        %768 = vmatprep.subr.mxu0 %v711
        %769 = vmatpush1.msra.mxu0 %v710
        %770 = vmatprep.subr.mxu0 %v709
        %771 = vmatpush1.msra.mxu0 %v708
        %772 = vmatprep.subr.mxu0 0.0
        %773 = vmatpush2.msra.mxu0 0.0
        %774 = vmatprep.subr.mxu0 0.0
        %775 = vmatpush2.msra.mxu0 0.0
        %776 = vmatprep.subr.mxu0 0.0
        %777 = vmatpush2.msra.mxu0 0.0
        %778 = vmatprep.subr.mxu0 0.0
        %779 = vmatpush2.msra.mxu0 0.0
        %780 = vmatprep.subr.mxu0 0.0
        %781 = vmatpush2.msra.mxu0 0.0
        %782 = vmatprep.subr.mxu0 0.0
        %783 = vmatpush2.msra.mxu0 0.0
        %784 = vmatprep.subr.mxu0 0.0
        %785 = vmatpush2.msra.mxu0 0.0
        %786 = vmatprep.subr.mxu0 0.0
        %787 = vmatpush2.msra.mxu0 0.0
        %788 = vmatprep.subr.mxu0 0.0
        %789 = vmatpush2.msra.mxu0 0.0
        %790 = vmatprep.subr.mxu0 0.0
        %791 = vmatpush2.msra.mxu0 0.0
        %792 = vmatprep.subr.mxu0 0.0
        %793 = vmatpush2.msra.mxu0 0.0
        %794 = vmatprep.subr.mxu0 0.0
        %795 = vmatpush2.msra.mxu0 0.0
        %796 = vmatprep.subr.mxu0 0.0
        %797 = vmatpush2.msra.mxu0 0.0
        %798 = vmatprep.subr.mxu0 0.0
        %799 = vmatpush2.msra.mxu0 0.0
        %800 = vmatprep.subr.mxu0 0.0
        %801 = vmatpush2.msra.mxu0 0.0
        %802 = vmatprep.subr.mxu0 0.0
        %803 = vmatpush2.msra.mxu0 0.0
        %804 = vmatprep.mubr.f32.mxu0 0.0
        %805 = vmatmul.mubr.f32.gmra.mxu0 %v702
        %v806 = vpop.f32.mrf.mxu0
        %v807 = vadd.f32 0.0, %v806
        %v808 = vpop.f32.mrf.mxu0
        %v809 = vadd.f32 0.0, %v808
        %810 = vmatprep.mubr.f32.mxu0 0.0
        %811 = vmatmul.mubr.f32.gmra.mxu0 %v703
        %v812 = vpop.f32.mrf.mxu0
        %v813 = vadd.f32 0.0, %v812
        %v814 = vpop.f32.mrf.mxu0
        %v815 = vadd.f32 0.0, %v814
        %816 = vdwg.mxu0
        %v817 = vadd.f32 %v704, %v807
        %v818 = vadd.f32 %v705, %v809
        %v819 = vadd.f32 %v706, %v813
        %v820 = vadd.f32 %v707, %v815
        %821 = vst [vmem:[#allocation3] sm:$0xff] %v817
        %822 = vst [vmem:[#allocation3 + $0x8] sm:$0xff] %v818
        %823 = vst [vmem:[#allocation3 + $0x10] sm:$0xff] %v819
        %824 = vst [vmem:[#allocation3 + $0x18] sm:$0xff] %v820
        %p825 = scmp.eq.s32.totalorder %s28, 1
        // Predicated region
        $region61: #{encoder_forward.4} parent=43 // pred_check
          %p826 = pneg %p825
        $region62: #{encoder_forward.4} parent=43 // pred_check_branch
          %828 = sbr.rel (%p826) target = $region64
        $region63: #{encoder_forward.4} parent=43 // pred_region
          %v829 = vld [vmem:[%s379] sm:$0xff]
          %v830 = vld [vmem:[%s379 + $0x8] sm:$0xff]
          %v831 = vld [vmem:[%s379 + $0x10] sm:$0xff]
          %v832 = vld [vmem:[%s379 + $0x18] sm:$0xff]
          %v833 = vld [vmem:[#allocation3] sm:$0xff]
          %v834 = vld [vmem:[#allocation3 + $0x8] sm:$0xff]
          %v835 = vld [vmem:[#allocation3 + $0x10] sm:$0xff]
          %v836 = vld [vmem:[#allocation3 + $0x18] sm:$0xff]
          %v837 = vadd.f32 %v829, %v833
          %v838 = vadd.f32 %v830, %v834
          %v839 = vadd.f32 %v831, %v835
          %v840 = vadd.f32 %v832, %v836
          %841 = vst [vmem:[%s387] sm:$0xff] %v837
          %842 = vst [vmem:[%s387 + $0x8] sm:$0xff] %v838
          %843 = vst [vmem:[%s387 + $0x10] sm:$0xff] %v839
          %844 = vst [vmem:[%s387 + $0x18] sm:$0xff] %v840
        $region64: #{encoder_forward.4} parent=43 // pred_fallthru
          _
        %s845 = smul.u32 2, %s27
        %p846 = scmp.lt.s32.totalorder %s845, 1
        %s847 = scalar_select %p846, %s845, 1
        %s848 = smul.addr %s847, 2
        %s849 = smul.addr %s848, 8
        %s850 = scalar_lea.vmem %s6, %s849
        // Predicated region
        $region65: #{encoder_forward.4} parent=43 // pred_check
          %p851 = pneg %p199
        $region66: #{encoder_forward.4} parent=43 // pred_check_branch
          %853 = sbr.rel (%p851) target = $region68
        $region67: #{encoder_forward.4} parent=43 // pred_region
          %s854 = smul.u32 2, %s27
        $region68: #{encoder_forward.4} parent=43 // pred_fallthru
          _
        // Predicated region
        $region69: #{encoder_forward.4} parent=43 // pred_check
          %p855 = pneg %p199
        $region70: #{encoder_forward.4} parent=43 // pred_check_branch
          %857 = sbr.rel (%p855) target = $region72
        $region71: #{encoder_forward.4} parent=43 // pred_region
          %s858 = smul.u32 2, %s27
          %p859 = scmp.lt.s32.totalorder %s858, 1
          %s860 = scalar_select %p859, %s858, 1
          %s861 = smul.addr %s860, 2
          %s862 = smul.addr %s861, 8
          %s863 = scalar_lea.vmem %s6, %s862
        $region72: #{encoder_forward.4} parent=43 // pred_fallthru
          _
      $region44: #{encoder_forward.4} parent=5 // pred_fallthru
        _
      %p864 = scmp.le.s32.totalorder 2, %s18
      // Predicated region
      $region73: #{encoder_forward.4} parent=5 // pred_check
        %p865 = pneg %p864
      $region74: #{encoder_forward.4} parent=5 // pred_check_branch
        %867 = sbr.rel (%p865) target = $region76
      $region75: #{encoder_forward.4} parent=5 // pred_region
        %s868 = ssub.s32 %s18, 2
      $region76: #{encoder_forward.4} parent=5 // pred_fallthru
        _
    $region6: #{encoder_forward.4} parent=1 // loop_footer
      %s22 = sadd.s32 1, %s18
    $region7: #{encoder_forward.4} parent=1 // loop_footer_branch
      %17 = sbr.rel target = $region3
    $region8: #{encoder_forward.4} parent=1 // loop_exit
      _
    %869 = vsyncpa [#allocation5], 1
    %s870 = scalar_lea.sflag [#allocation5], 1
    %871 = vsyncpa %s870, 1
    %872 = vsyncpa [#allocation7], 1
    %s873 = scalar_lea.sflag [#allocation7], 1
    %874 = vsyncpa %s873, 1

</llo_original>
